<compile_context>
chip_gen: v5e
topology: v5e:2x2
jax: 0.10.0
libtpu: 0.0.40
codegen_flags: <defaults>
</compile_context>

<pallas_src>
import jax
import jax.numpy as jnp
from jax import lax
from jax.experimental import pallas as pl
from jax.experimental.pallas import tpu as pltpu


_LANES = 128   # batch axis lives on the lane dimension
_CHUNK = 8     # inner unroll: one full 8-sublane row group per dense store


def _round_up(x, m):
    return ((x + m - 1) // m) * m


def _make_kernel(T, TILE_T, B_BLK, needs_mask):
    n_chunks = TILE_T // _CHUNK

    def kernel(w_ref, x_ref, xp_ref, zinit_ref,            # inputs
               out_ref, zfin_ref,                          # outputs
               p1, p2, p3, p4, m1, m2, m3, m4,             # scratch (precompute)
               base_s, zstate):                            # scratch
        ti = pl.program_id(1)

        a0 = w_ref[0]
        a1 = w_ref[1]
        a2 = w_ref[2]
        a3 = w_ref[3]
        a4 = w_ref[4]
        h = w_ref[5]
        beta = w_ref[6]
        b = w_ref[7]
        # weights[8:11] (c1, c2, c3) are unused by GRDPINet.forward.

        # ---- carried z state: initialise from z_init on the first T block ----
        @pl.when(ti == 0)
        def _():
            zstate[...] = zinit_ref[...]

        # ---- hoisted, z-independent precompute over the whole tile ----------
        # Full-vreg vector work; removes the sqrt (EUP) and most VALU ops from
        # the serial dependence chain below.
        u = x_ref[...]                         # (TILE_T, B_BLK)
        du = u - xp_ref[...]
        bs = beta * jnp.sqrt(du * du + 1e-10)
        base_s[...] = a0 * u + b
        r = h * 1.0 + bs
        p1[...] = u + r
        m1[...] = u - r
        r = h * 2.0 + bs
        p2[...] = u + r
        m2[...] = u - r
        r = h * 3.0 + bs
        p3[...] = u + r
        m3[...] = u - r
        r = h * 4.0 + bs
        p4[...] = u + r
        m4[...] = u - r

        # loop-invariant vector splats of the output coefficients (not re-splat
        # per iteration — JAX does not CSE broadcasts inside the loop).
        ones = jnp.ones((1, B_BLK), jnp.float32)
        a1v = a1 * ones
        a2v = a2 * ones
        a3v = a3 * ones
        a4v = a4 * ones

        zs = zstate[...]                       # (4, B_BLK)
        z_init_carry = (zs[0:1, :], zs[1:2, :], zs[2:3, :], zs[3:4, :])

        t_base = ti * TILE_T

        def step(pv, mv, z):
            # z' = (u - r) + relu((u + r) - relu((u + r) - z) - (u - r))
            return mv + jnp.maximum(pv - jnp.maximum(pv - z, 0.0) - mv, 0.0)

        def chunk_body(c, carry):
            z1, z2, z3, z4 = carry
            t0 = pl.multiple_of(c * _CHUNK, _CHUNK)
            p1b = p1[pl.ds(t0, _CHUNK), :]
            p2b = p2[pl.ds(t0, _CHUNK), :]
            p3b = p3[pl.ds(t0, _CHUNK), :]
            p4b = p4[pl.ds(t0, _CHUNK), :]
            m1b = m1[pl.ds(t0, _CHUNK), :]
            m2b = m2[pl.ds(t0, _CHUNK), :]
            m3b = m3[pl.ds(t0, _CHUNK), :]
            m4b = m4[pl.ds(t0, _CHUNK), :]
            baseb = base_s[pl.ds(t0, _CHUNK), :]

            rows = []
            for k in range(_CHUNK):            # static unroll inside the chunk
                z1n = step(p1b[k:k + 1, :], m1b[k:k + 1, :], z1)
                z2n = step(p2b[k:k + 1, :], m2b[k:k + 1, :], z2)
                z3n = step(p3b[k:k + 1, :], m3b[k:k + 1, :], z3)
                z4n = step(p4b[k:k + 1, :], m4b[k:k + 1, :], z4)
                if needs_mask:
                    # freeze the carried state on padded time steps (t >= T)
                    valid = (t_base + t0 + k) < T
                    z1 = jnp.where(valid, z1n, z1)
                    z2 = jnp.where(valid, z2n, z2)
                    z3 = jnp.where(valid, z3n, z3)
                    z4 = jnp.where(valid, z4n, z4)
                else:
                    z1, z2, z3, z4 = z1n, z2n, z3n, z4n
                rows.append(baseb[k:k + 1, :]
                            + a1v * z1n + a2v * z2n + a3v * z3n + a4v * z4n)

            # one dense (CHUNK, B_BLK) store instead of CHUNK masked row stores
            out_ref[pl.ds(t0, _CHUNK), :] = jnp.concatenate(rows, axis=0)
            return (z1, z2, z3, z4)

        z1, z2, z3, z4 = lax.fori_loop(0, n_chunks, chunk_body, z_init_carry)

        zstate[...] = jnp.concatenate([z1, z2, z3, z4], axis=0)

        @pl.when(ti == pl.num_programs(1) - 1)
        def _():
            zfin_ref[...] = zstate[...]

    return kernel


def grdpi_forward(x, x_pre, z_init, weights, *, tile_t=None):
    """Mirrors GRDPINet.forward.

    x, x_pre: (B, T, 1) float32
    z_init:   (B, 1, 4) float32
    weights:  (11,)     float32
    returns (custom_output (B, T, 1), weights (11,), z (B, 1, 4))
    """
    B, T, F = x.shape
    assert F == 1

    # time-major, batch on the lane axis
    # TODO(synk): if the surrounding model can keep data time-major, these
    # wrapper transposes (3 extra HBM passes for long T) can be dropped.
    x_tb = jnp.transpose(x[:, :, 0]).astype(jnp.float32)        # (T, B)
    xp_tb = jnp.transpose(x_pre[:, :, 0]).astype(jnp.float32)   # (T, B)
    z_tb = jnp.transpose(z_init[:, 0, :]).astype(jnp.float32)   # (4, B)

    B_BLK = _LANES
    B_pad = _round_up(B, B_BLK)
    if tile_t is None:
        TILE_T = min(256, _round_up(T, _CHUNK))   # small footprint on all chips
    else:
        TILE_T = max(_CHUNK, _round_up(tile_t, _CHUNK))
    T_pad = _round_up(T, TILE_T)

    if B_pad != B:
        x_tb = jnp.pad(x_tb, ((0, 0), (0, B_pad - B)))
        xp_tb = jnp.pad(xp_tb, ((0, 0), (0, B_pad - B)))
        z_tb = jnp.pad(z_tb, ((0, 0), (0, B_pad - B)))
    if T_pad != T:
        x_tb = jnp.pad(x_tb, ((0, T_pad - T), (0, 0)))
        xp_tb = jnp.pad(xp_tb, ((0, T_pad - T), (0, 0)))

    grid = (B_pad // B_BLK, T_pad // TILE_T)
    kernel = _make_kernel(T, TILE_T, B_BLK, needs_mask=(T_pad != T))

    out_tb, z_out_tb = pl.pallas_call(
        kernel,
        out_shape=(
            jax.ShapeDtypeStruct((T_pad, B_pad), jnp.float32),
            jax.ShapeDtypeStruct((4, B_pad), jnp.float32),
        ),
        grid=grid,
        in_specs=[
            pl.BlockSpec(memory_space=pltpu.MemorySpace.SMEM),           # weights
            pl.BlockSpec((TILE_T, B_BLK), lambda bi, ti: (ti, bi)),      # x
            pl.BlockSpec((TILE_T, B_BLK), lambda bi, ti: (ti, bi)),      # x_pre
            pl.BlockSpec((4, B_BLK), lambda bi, ti: (0, bi)),            # z_init
        ],
        out_specs=(
            pl.BlockSpec((TILE_T, B_BLK), lambda bi, ti: (ti, bi)),      # out
            pl.BlockSpec((4, B_BLK), lambda bi, ti: (0, bi)),            # z final
        ),
        scratch_shapes=[pltpu.VMEM((TILE_T, B_BLK), jnp.float32)] * 9
                       + [pltpu.VMEM((4, B_BLK), jnp.float32)],
        compiler_params=pltpu.CompilerParams(
            dimension_semantics=("parallel", "arbitrary")),
    )(weights.astype(jnp.float32), x_tb, xp_tb, z_tb)

    custom_output = jnp.transpose(out_tb[:T, :B])[:, :, None]   # (B, T, 1)
    z_final = jnp.transpose(z_out_tb[:, :B])[:, None, :]        # (B, 1, 4)
    return custom_output, weights, z_final


# ---------------- pure-JAX reference (correctness sanity check) ----------------
def _ref_forward(x, x_pre, z_init, weights):
    a0, a1, a2, a3, a4, h, beta, b = (weights[0], weights[1], weights[2], weights[3],
                                      weights[4], weights[5], weights[6], weights[7])

    def zi(u, r, zp):
        return u - r + jnp.maximum(u + r - jnp.maximum(u + r - zp, 0.0) - (u - r), 0.0)

    def ri(h, i, beta, du):
        return h * i + beta * jnp.sqrt(du * du + 1e-10)

    z = z_init
    outs = []
    for i in range(x.shape[1]):
        u = x[:, i:i + 1, :]
        u_pre = x_pre[:, i:i + 1, :]
        du = u - u_pre
        r1, r2, r3, r4 = ri(h, 1, beta, du), ri(h, 2, beta, du), ri(h, 3, beta, du), ri(h, 4, beta, du)
        z1 = zi(u, r1, z[:, :, 0:1])
        z2 = zi(u, r2, z[:, :, 1:2])
        z3 = zi(u, r3, z[:, :, 2:3])
        z4 = zi(u, r4, z[:, :, 3:4])
        out_i = a0 * u + a1 * z1 + a2 * z2 + a3 * z3 + a4 * z4 + b
        z = jnp.concatenate([z1, z2, z3, z4], axis=2)
        outs.append(out_i)
    return jnp.concatenate(outs, axis=1), weights, z


if __name__ == "__main__":
    key = jax.random.PRNGKey(0)
    k1, k2, k3, k4, k5, k6 = jax.random.split(key, 6)

    # nn.Parameter(torch.ones(11) * 0.5)
    weights = jnp.full((11,), 0.5, dtype=jnp.float32)

    # Case 1: exact-tiling small shape (B=2, T=8)
    B, T = 2, 8
    x = jax.random.normal(k1, (B, T, 1), dtype=jnp.float32)
    x_pre = jax.random.normal(k2, (B, T, 1), dtype=jnp.float32)
    z_init = jax.random.normal(k3, (B, 1, 4), dtype=jnp.float32)

    out, w_out, z_out = grdpi_forward(x, x_pre, z_init, weights)
    jax.block_until_ready(out)
    jax.block_until_ready(z_out)

    ref_out, _, ref_z = _ref_forward(x, x_pre, z_init, weights)
    assert jnp.allclose(out, ref_out, atol=1e-5, rtol=1e-5), "output mismatch"
    assert jnp.allclose(z_out, ref_z, atol=1e-5, rtol=1e-5), "z-state mismatch"

    # Case 2: exercises time padding / masking and the chunked inner loop
    B2, T2 = 3, 13
    x2 = jax.random.normal(k4, (B2, T2, 1), dtype=jnp.float32)
    x2_pre = jax.random.normal(k5, (B2, T2, 1), dtype=jnp.float32)
    z2_init = jax.random.normal(k6, (B2, 1, 4), dtype=jnp.float32)

    out2, _, z_out2 = grdpi_forward(x2, x2_pre, z2_init, weights)
    jax.block_until_ready(out2)
    jax.block_until_ready(z_out2)

    ref_out2, _, ref_z2 = _ref_forward(x2, x2_pre, z2_init, weights)
    assert jnp.allclose(out2, ref_out2, atol=1e-5, rtol=1e-5), "padded output mismatch"
    assert jnp.allclose(z_out2, ref_z2, atol=1e-5, rtol=1e-5), "padded z-state mismatch"

    print("KERNEL_OK")
</pallas_src>

<mosaic_0001>
module attributes {stable_mosaic.version = 11 : i64} {
  func.func @kernel(%arg0: i32, %arg1: i32, %arg2: memref<11xf32, #tpu.memory_space<smem>>, %arg3: memref<8x128xf32, #tpu.memory_space<vmem>>, %arg4: memref<8x128xf32, #tpu.memory_space<vmem>>, %arg5: memref<4x128xf32, #tpu.memory_space<vmem>>, %arg6: memref<8x128xf32, #tpu.memory_space<vmem>>, %arg7: memref<4x128xf32, #tpu.memory_space<vmem>>, %arg8: memref<8x128xf32, #tpu.memory_space<vmem>>, %arg9: memref<8x128xf32, #tpu.memory_space<vmem>>, %arg10: memref<8x128xf32, #tpu.memory_space<vmem>>, %arg11: memref<8x128xf32, #tpu.memory_space<vmem>>, %arg12: memref<8x128xf32, #tpu.memory_space<vmem>>, %arg13: memref<8x128xf32, #tpu.memory_space<vmem>>, %arg14: memref<8x128xf32, #tpu.memory_space<vmem>>, %arg15: memref<8x128xf32, #tpu.memory_space<vmem>>, %arg16: memref<8x128xf32, #tpu.memory_space<vmem>>, %arg17: memref<4x128xf32, #tpu.memory_space<vmem>>) attributes {dimension_semantics = [#tpu.dimension_semantics<parallel>, #tpu.dimension_semantics<arbitrary>], iteration_bounds = array<i64: 1, 1>, scalar_prefetch = 0 : i64, scratch_operands = 10 : i64, tpu.core_type = #tpu.core_type<tc>, window_params = [{transform_indices = @transform_0, window_bounds = array<i64: 11>}, {transform_indices = @transform_1, window_bounds = array<i64: 8, 128>}, {transform_indices = @transform_2, window_bounds = array<i64: 8, 128>}, {transform_indices = @transform_3, window_bounds = array<i64: 4, 128>}, {transform_indices = @transform_4, window_bounds = array<i64: 8, 128>}, {transform_indices = @transform_5, window_bounds = array<i64: 4, 128>}]} {
    %c0 = arith.constant 0 : index
    %0 = memref.load %arg2[%c0] : memref<11xf32, #tpu.memory_space<smem>>
    %c1 = arith.constant 1 : index
    %1 = memref.load %arg2[%c1] : memref<11xf32, #tpu.memory_space<smem>>
    %c2 = arith.constant 2 : index
    %2 = memref.load %arg2[%c2] : memref<11xf32, #tpu.memory_space<smem>>
    %c3 = arith.constant 3 : index
    %3 = memref.load %arg2[%c3] : memref<11xf32, #tpu.memory_space<smem>>
    %c4 = arith.constant 4 : index
    %4 = memref.load %arg2[%c4] : memref<11xf32, #tpu.memory_space<smem>>
    %c5 = arith.constant 5 : index
    %5 = memref.load %arg2[%c5] : memref<11xf32, #tpu.memory_space<smem>>
    %c6 = arith.constant 6 : index
    %6 = memref.load %arg2[%c6] : memref<11xf32, #tpu.memory_space<smem>>
    %c7 = arith.constant 7 : index
    %7 = memref.load %arg2[%c7] : memref<11xf32, #tpu.memory_space<smem>>
    %c0_i32 = arith.constant 0 : i32
    %8 = arith.cmpi eq, %arg1, %c0_i32 : i32
    %9 = arith.extui %8 : i1 to i32
    %c0_i32_0 = arith.constant 0 : i32
    %10 = arith.cmpi ne, %9, %c0_i32_0 : i32
    scf.if %10 {
      %c0_109 = arith.constant 0 : index
      %c0_110 = arith.constant 0 : index
      %487 = vector.load %arg5[%c0_109, %c0_110] : memref<4x128xf32, #tpu.memory_space<vmem>>, vector<4x128xf32>
      %c0_111 = arith.constant 0 : index
      %c0_112 = arith.constant 0 : index
      %488 = vector.load %arg17[%c0_111, %c0_112] : memref<4x128xf32, #tpu.memory_space<vmem>>, vector<4x128xf32>
      tpu.vector_store %arg17[%c0_111, %c0_112], %487 {strides = array<i32>} : memref<4x128xf32, #tpu.memory_space<vmem>>, vector<4x128xf32>,
    } else {
    }
    %c0_1 = arith.constant 0 : index
    %c0_2 = arith.constant 0 : index
    %11 = vector.load %arg3[%c0_1, %c0_2] : memref<8x128xf32, #tpu.memory_space<vmem>>, vector<8x128xf32>
    %c0_3 = arith.constant 0 : index
    %c0_4 = arith.constant 0 : index
    %12 = vector.load %arg4[%c0_3, %c0_4] : memref<8x128xf32, #tpu.memory_space<vmem>>, vector<8x128xf32>
    %13 = arith.subf %11, %12 : vector<8x128xf32>
    %14 = arith.mulf %13, %13 : vector<8x128xf32>
    %cst = arith.constant 1.000000e-10 : f32
    %15 = vector.broadcast %cst : f32 to vector<8x128xf32>
    %16 = arith.addf %14, %15 : vector<8x128xf32>
    %17 = math.sqrt %16 : vector<8x128xf32>
    %18 = vector.broadcast %6 : f32 to vector<8x128xf32>
    %19 = arith.mulf %18, %17 : vector<8x128xf32>
    %20 = vector.broadcast %0 : f32 to vector<8x128xf32>
    %21 = arith.mulf %20, %11 : vector<8x128xf32>
    %22 = vector.broadcast %7 : f32 to vector<8x128xf32>
    %23 = arith.addf %21, %22 : vector<8x128xf32>
    %c0_5 = arith.constant 0 : index
    %c0_6 = arith.constant 0 : index
    %24 = vector.load %arg16[%c0_5, %c0_6] : memref<8x128xf32, #tpu.memory_space<vmem>>, vector<8x128xf32>
    tpu.vector_store %arg16[%c0_5, %c0_6], %23 {strides = array<i32>} : memref<8x128xf32, #tpu.memory_space<vmem>>, vector<8x128xf32>,
    %cst_7 = arith.constant 1.000000e+00 : f32
    %25 = arith.mulf %5, %cst_7 : f32
    %26 = vector.broadcast %25 : f32 to vector<8x128xf32>
    %27 = arith.addf %26, %19 : vector<8x128xf32>
    %28 = arith.addf %11, %27 : vector<8x128xf32>
    %c0_8 = arith.constant 0 : index
    %c0_9 = arith.constant 0 : index
    %29 = vector.load %arg8[%c0_8, %c0_9] : memref<8x128xf32, #tpu.memory_space<vmem>>, vector<8x128xf32>
    tpu.vector_store %arg8[%c0_8, %c0_9], %28 {strides = array<i32>} : memref<8x128xf32, #tpu.memory_space<vmem>>, vector<8x128xf32>,
    %30 = arith.subf %11, %27 : vector<8x128xf32>
    %c0_10 = arith.constant 0 : index
    %c0_11 = arith.constant 0 : index
    %31 = vector.load %arg12[%c0_10, %c0_11] : memref<8x128xf32, #tpu.memory_space<vmem>>, vector<8x128xf32>
    tpu.vector_store %arg12[%c0_10, %c0_11], %30 {strides = array<i32>} : memref<8x128xf32, #tpu.memory_space<vmem>>, vector<8x128xf32>,
    %cst_12 = arith.constant 2.000000e+00 : f32
    %32 = arith.mulf %5, %cst_12 : f32
    %33 = vector.broadcast %32 : f32 to vector<8x128xf32>
    %34 = arith.addf %33, %19 : vector<8x128xf32>
    %35 = arith.addf %11, %34 : vector<8x128xf32>
    %c0_13 = arith.constant 0 : index
    %c0_14 = arith.constant 0 : index
    %36 = vector.load %arg9[%c0_13, %c0_14] : memref<8x128xf32, #tpu.memory_space<vmem>>, vector<8x128xf32>
    tpu.vector_store %arg9[%c0_13, %c0_14], %35 {strides = array<i32>} : memref<8x128xf32, #tpu.memory_space<vmem>>, vector<8x128xf32>,
    %37 = arith.subf %11, %34 : vector<8x128xf32>
    %c0_15 = arith.constant 0 : index
    %c0_16 = arith.constant 0 : index
    %38 = vector.load %arg13[%c0_15, %c0_16] : memref<8x128xf32, #tpu.memory_space<vmem>>, vector<8x128xf32>
    tpu.vector_store %arg13[%c0_15, %c0_16], %37 {strides = array<i32>} : memref<8x128xf32, #tpu.memory_space<vmem>>, vector<8x128xf32>,
    %cst_17 = arith.constant 3.000000e+00 : f32
    %39 = arith.mulf %5, %cst_17 : f32
    %40 = vector.broadcast %39 : f32 to vector<8x128xf32>
    %41 = arith.addf %40, %19 : vector<8x128xf32>
    %42 = arith.addf %11, %41 : vector<8x128xf32>
    %c0_18 = arith.constant 0 : index
    %c0_19 = arith.constant 0 : index
    %43 = vector.load %arg10[%c0_18, %c0_19] : memref<8x128xf32, #tpu.memory_space<vmem>>, vector<8x128xf32>
    tpu.vector_store %arg10[%c0_18, %c0_19], %42 {strides = array<i32>} : memref<8x128xf32, #tpu.memory_space<vmem>>, vector<8x128xf32>,
    %44 = arith.subf %11, %41 : vector<8x128xf32>
    %c0_20 = arith.constant 0 : index
    %c0_21 = arith.constant 0 : index
    %45 = vector.load %arg14[%c0_20, %c0_21] : memref<8x128xf32, #tpu.memory_space<vmem>>, vector<8x128xf32>
    tpu.vector_store %arg14[%c0_20, %c0_21], %44 {strides = array<i32>} : memref<8x128xf32, #tpu.memory_space<vmem>>, vector<8x128xf32>,
    %cst_22 = arith.constant 4.000000e+00 : f32
    %46 = arith.mulf %5, %cst_22 : f32
    %47 = vector.broadcast %46 : f32 to vector<8x128xf32>
    %48 = arith.addf %47, %19 : vector<8x128xf32>
    %49 = arith.addf %11, %48 : vector<8x128xf32>
    %c0_23 = arith.constant 0 : index
    %c0_24 = arith.constant 0 : index
    %50 = vector.load %arg11[%c0_23, %c0_24] : memref<8x128xf32, #tpu.memory_space<vmem>>, vector<8x128xf32>
    tpu.vector_store %arg11[%c0_23, %c0_24], %49 {strides = array<i32>} : memref<8x128xf32, #tpu.memory_space<vmem>>, vector<8x128xf32>,
    %51 = arith.subf %11, %48 : vector<8x128xf32>
    %c0_25 = arith.constant 0 : index
    %c0_26 = arith.constant 0 : index
    %52 = vector.load %arg15[%c0_25, %c0_26] : memref<8x128xf32, #tpu.memory_space<vmem>>, vector<8x128xf32>
    tpu.vector_store %arg15[%c0_25, %c0_26], %51 {strides = array<i32>} : memref<8x128xf32, #tpu.memory_space<vmem>>, vector<8x128xf32>,
    %cst_27 = arith.constant 1.000000e+00 : f32
    %53 = vector.broadcast %cst_27 : f32 to vector<1x128xf32>
    %54 = vector.broadcast %1 : f32 to vector<1x128xf32>
    %55 = arith.mulf %54, %53 : vector<1x128xf32>
    %56 = vector.broadcast %2 : f32 to vector<1x128xf32>
    %57 = arith.mulf %56, %53 : vector<1x128xf32>
    %58 = vector.broadcast %3 : f32 to vector<1x128xf32>
    %59 = arith.mulf %58, %53 : vector<1x128xf32>
    %60 = vector.broadcast %4 : f32 to vector<1x128xf32>
    %61 = arith.mulf %60, %53 : vector<1x128xf32>
    %c0_28 = arith.constant 0 : index
    %c0_29 = arith.constant 0 : index
    %62 = vector.load %arg17[%c0_28, %c0_29] : memref<4x128xf32, #tpu.memory_space<vmem>>, vector<4x128xf32>
    %63 = vector.extract_strided_slice %62 {offsets = [0, 0], sizes = [1, 128], strides = [1, 1]} : vector<4x128xf32> to vector<1x128xf32>
    %64 = vector.extract_strided_slice %62 {offsets = [1, 0], sizes = [1, 128], strides = [1, 1]} : vector<4x128xf32> to vector<1x128xf32>
    %65 = vector.extract_strided_slice %62 {offsets = [2, 0], sizes = [1, 128], strides = [1, 1]} : vector<4x128xf32> to vector<1x128xf32>
    %66 = vector.extract_strided_slice %62 {offsets = [3, 0], sizes = [1, 128], strides = [1, 1]} : vector<4x128xf32> to vector<1x128xf32>
    %c0_i32_30 = arith.constant 0 : i32
    %c8_i32 = arith.constant 8 : i32
    %67 = arith.muli %c0_i32_30, %c8_i32 : i32
    %68 = tpu.assume_multiple %67, 8 : i32
    %69 = arith.index_cast %68 : i32 to index
    %c0_31 = arith.constant 0 : index
    %70 = vector.load %arg8[%69, %c0_31] : memref<8x128xf32, #tpu.memory_space<vmem>>, vector<8x128xf32>
    %71 = arith.index_cast %68 : i32 to index
    %c0_32 = arith.constant 0 : index
    %72 = vector.load %arg9[%71, %c0_32] : memref<8x128xf32, #tpu.memory_space<vmem>>, vector<8x128xf32>
    %73 = arith.index_cast %68 : i32 to index
    %c0_33 = arith.constant 0 : index
    %74 = vector.load %arg10[%73, %c0_33] : memref<8x128xf32, #tpu.memory_space<vmem>>, vector<8x128xf32>
    %75 = arith.index_cast %68 : i32 to index
    %c0_34 = arith.constant 0 : index
    %76 = vector.load %arg11[%75, %c0_34] : memref<8x128xf32, #tpu.memory_space<vmem>>, vector<8x128xf32>
    %77 = arith.index_cast %68 : i32 to index
    %c0_35 = arith.constant 0 : index
    %78 = vector.load %arg12[%77, %c0_35] : memref<8x128xf32, #tpu.memory_space<vmem>>, vector<8x128xf32>
    %79 = arith.index_cast %68 : i32 to index
    %c0_36 = arith.constant 0 : index
    %80 = vector.load %arg13[%79, %c0_36] : memref<8x128xf32, #tpu.memory_space<vmem>>, vector<8x128xf32>
    %81 = arith.index_cast %68 : i32 to index
    %c0_37 = arith.constant 0 : index
    %82 = vector.load %arg14[%81, %c0_37] : memref<8x128xf32, #tpu.memory_space<vmem>>, vector<8x128xf32>
    %83 = arith.index_cast %68 : i32 to index
    %c0_38 = arith.constant 0 : index
    %84 = vector.load %arg15[%83, %c0_38] : memref<8x128xf32, #tpu.memory_space<vmem>>, vector<8x128xf32>
    %85 = arith.index_cast %68 : i32 to index
    %c0_39 = arith.constant 0 : index
    %86 = vector.load %arg16[%85, %c0_39] : memref<8x128xf32, #tpu.memory_space<vmem>>, vector<8x128xf32>
    %87 = vector.extract_strided_slice %70 {offsets = [0, 0], sizes = [1, 128], strides = [1, 1]} : vector<8x128xf32> to vector<1x128xf32>
    %88 = vector.extract_strided_slice %78 {offsets = [0, 0], sizes = [1, 128], strides = [1, 1]} : vector<8x128xf32> to vector<1x128xf32>
    %89 = arith.subf %87, %63 : vector<1x128xf32>
    %cst_40 = arith.constant 0.000000e+00 : f32
    %90 = vector.broadcast %cst_40 : f32 to vector<1x128xf32>
    %91 = arith.maximumf %89, %90 : vector<1x128xf32>
    %92 = arith.subf %87, %91 : vector<1x128xf32>
    %93 = arith.subf %92, %88 : vector<1x128xf32>
    %cst_41 = arith.constant 0.000000e+00 : f32
    %94 = vector.broadcast %cst_41 : f32 to vector<1x128xf32>
    %95 = arith.maximumf %93, %94 : vector<1x128xf32>
    %96 = arith.addf %88, %95 : vector<1x128xf32>
    %97 = vector.extract_strided_slice %72 {offsets = [0, 0], sizes = [1, 128], strides = [1, 1]} : vector<8x128xf32> to vector<1x128xf32>
    %98 = vector.extract_strided_slice %80 {offsets = [0, 0], sizes = [1, 128], strides = [1, 1]} : vector<8x128xf32> to vector<1x128xf32>
    %99 = arith.subf %97, %64 : vector<1x128xf32>
    %cst_42 = arith.constant 0.000000e+00 : f32
    %100 = vector.broadcast %cst_42 : f32 to vector<1x128xf32>
    %101 = arith.maximumf %99, %100 : vector<1x128xf32>
    %102 = arith.subf %97, %101 : vector<1x128xf32>
    %103 = arith.subf %102, %98 : vector<1x128xf32>
    %cst_43 = arith.constant 0.000000e+00 : f32
    %104 = vector.broadcast %cst_43 : f32 to vector<1x128xf32>
    %105 = arith.maximumf %103, %104 : vector<1x128xf32>
    %106 = arith.addf %98, %105 : vector<1x128xf32>
    %107 = vector.extract_strided_slice %74 {offsets = [0, 0], sizes = [1, 128], strides = [1, 1]} : vector<8x128xf32> to vector<1x128xf32>
    %108 = vector.extract_strided_slice %82 {offsets = [0, 0], sizes = [1, 128], strides = [1, 1]} : vector<8x128xf32> to vector<1x128xf32>
    %109 = arith.subf %107, %65 : vector<1x128xf32>
    %cst_44 = arith.constant 0.000000e+00 : f32
    %110 = vector.broadcast %cst_44 : f32 to vector<1x128xf32>
    %111 = arith.maximumf %109, %110 : vector<1x128xf32>
    %112 = arith.subf %107, %111 : vector<1x128xf32>
    %113 = arith.subf %112, %108 : vector<1x128xf32>
    %cst_45 = arith.constant 0.000000e+00 : f32
    %114 = vector.broadcast %cst_45 : f32 to vector<1x128xf32>
    %115 = arith.maximumf %113, %114 : vector<1x128xf32>
    %116 = arith.addf %108, %115 : vector<1x128xf32>
    %117 = vector.extract_strided_slice %76 {offsets = [0, 0], sizes = [1, 128], strides = [1, 1]} : vector<8x128xf32> to vector<1x128xf32>
    %118 = vector.extract_strided_slice %84 {offsets = [0, 0], sizes = [1, 128], strides = [1, 1]} : vector<8x128xf32> to vector<1x128xf32>
    %119 = arith.subf %117, %66 : vector<1x128xf32>
    %cst_46 = arith.constant 0.000000e+00 : f32
    %120 = vector.broadcast %cst_46 : f32 to vector<1x128xf32>
    %121 = arith.maximumf %119, %120 : vector<1x128xf32>
    %122 = arith.subf %117, %121 : vector<1x128xf32>
    %123 = arith.subf %122, %118 : vector<1x128xf32>
    %cst_47 = arith.constant 0.000000e+00 : f32
    %124 = vector.broadcast %cst_47 : f32 to vector<1x128xf32>
    %125 = arith.maximumf %123, %124 : vector<1x128xf32>
    %126 = arith.addf %118, %125 : vector<1x128xf32>
    %127 = vector.extract_strided_slice %86 {offsets = [0, 0], sizes = [1, 128], strides = [1, 1]} : vector<8x128xf32> to vector<1x128xf32>
    %128 = arith.mulf %55, %96 : vector<1x128xf32>
    %129 = arith.addf %127, %128 : vector<1x128xf32>
    %130 = arith.mulf %57, %106 : vector<1x128xf32>
    %131 = arith.addf %129, %130 : vector<1x128xf32>
    %132 = arith.mulf %59, %116 : vector<1x128xf32>
    %133 = arith.addf %131, %132 : vector<1x128xf32>
    %134 = arith.mulf %61, %126 : vector<1x128xf32>
    %135 = arith.addf %133, %134 : vector<1x128xf32>
    %136 = vector.extract_strided_slice %70 {offsets = [1, 0], sizes = [1, 128], strides = [1, 1]} : vector<8x128xf32> to vector<1x128xf32>
    %137 = vector.extract_strided_slice %78 {offsets = [1, 0], sizes = [1, 128], strides = [1, 1]} : vector<8x128xf32> to vector<1x128xf32>
    %138 = arith.subf %136, %96 : vector<1x128xf32>
    %cst_48 = arith.constant 0.000000e+00 : f32
    %139 = vector.broadcast %cst_48 : f32 to vector<1x128xf32>
    %140 = arith.maximumf %138, %139 : vector<1x128xf32>
    %141 = arith.subf %136, %140 : vector<1x128xf32>
    %142 = arith.subf %141, %137 : vector<1x128xf32>
    %cst_49 = arith.constant 0.000000e+00 : f32
    %143 = vector.broadcast %cst_49 : f32 to vector<1x128xf32>
    %144 = arith.maximumf %142, %143 : vector<1x128xf32>
    %145 = arith.addf %137, %144 : vector<1x128xf32>
    %146 = vector.extract_strided_slice %72 {offsets = [1, 0], sizes = [1, 128], strides = [1, 1]} : vector<8x128xf32> to vector<1x128xf32>
    %147 = vector.extract_strided_slice %80 {offsets = [1, 0], sizes = [1, 128], strides = [1, 1]} : vector<8x128xf32> to vector<1x128xf32>
    %148 = arith.subf %146, %106 : vector<1x128xf32>
    %cst_50 = arith.constant 0.000000e+00 : f32
    %149 = vector.broadcast %cst_50 : f32 to vector<1x128xf32>
    %150 = arith.maximumf %148, %149 : vector<1x128xf32>
    %151 = arith.subf %146, %150 : vector<1x128xf32>
    %152 = arith.subf %151, %147 : vector<1x128xf32>
    %cst_51 = arith.constant 0.000000e+00 : f32
    %153 = vector.broadcast %cst_51 : f32 to vector<1x128xf32>
    %154 = arith.maximumf %152, %153 : vector<1x128xf32>
    %155 = arith.addf %147, %154 : vector<1x128xf32>
    %156 = vector.extract_strided_slice %74 {offsets = [1, 0], sizes = [1, 128], strides = [1, 1]} : vector<8x128xf32> to vector<1x128xf32>
    %157 = vector.extract_strided_slice %82 {offsets = [1, 0], sizes = [1, 128], strides = [1, 1]} : vector<8x128xf32> to vector<1x128xf32>
    %158 = arith.subf %156, %116 : vector<1x128xf32>
    %cst_52 = arith.constant 0.000000e+00 : f32
    %159 = vector.broadcast %cst_52 : f32 to vector<1x128xf32>
    %160 = arith.maximumf %158, %159 : vector<1x128xf32>
    %161 = arith.subf %156, %160 : vector<1x128xf32>
    %162 = arith.subf %161, %157 : vector<1x128xf32>
    %cst_53 = arith.constant 0.000000e+00 : f32
    %163 = vector.broadcast %cst_53 : f32 to vector<1x128xf32>
    %164 = arith.maximumf %162, %163 : vector<1x128xf32>
    %165 = arith.addf %157, %164 : vector<1x128xf32>
    %166 = vector.extract_strided_slice %76 {offsets = [1, 0], sizes = [1, 128], strides = [1, 1]} : vector<8x128xf32> to vector<1x128xf32>
    %167 = vector.extract_strided_slice %84 {offsets = [1, 0], sizes = [1, 128], strides = [1, 1]} : vector<8x128xf32> to vector<1x128xf32>
    %168 = arith.subf %166, %126 : vector<1x128xf32>
    %cst_54 = arith.constant 0.000000e+00 : f32
    %169 = vector.broadcast %cst_54 : f32 to vector<1x128xf32>
    %170 = arith.maximumf %168, %169 : vector<1x128xf32>
    %171 = arith.subf %166, %170 : vector<1x128xf32>
    %172 = arith.subf %171, %167 : vector<1x128xf32>
    %cst_55 = arith.constant 0.000000e+00 : f32
    %173 = vector.broadcast %cst_55 : f32 to vector<1x128xf32>
    %174 = arith.maximumf %172, %173 : vector<1x128xf32>
    %175 = arith.addf %167, %174 : vector<1x128xf32>
    %176 = vector.extract_strided_slice %86 {offsets = [1, 0], sizes = [1, 128], strides = [1, 1]} : vector<8x128xf32> to vector<1x128xf32>
    %177 = arith.mulf %55, %145 : vector<1x128xf32>
    %178 = arith.addf %176, %177 : vector<1x128xf32>
    %179 = arith.mulf %57, %155 : vector<1x128xf32>
    %180 = arith.addf %178, %179 : vector<1x128xf32>
    %181 = arith.mulf %59, %165 : vector<1x128xf32>
    %182 = arith.addf %180, %181 : vector<1x128xf32>
    %183 = arith.mulf %61, %175 : vector<1x128xf32>
    %184 = arith.addf %182, %183 : vector<1x128xf32>
    %185 = vector.extract_strided_slice %70 {offsets = [2, 0], sizes = [1, 128], strides = [1, 1]} : vector<8x128xf32> to vector<1x128xf32>
    %186 = vector.extract_strided_slice %78 {offsets = [2, 0], sizes = [1, 128], strides = [1, 1]} : vector<8x128xf32> to vector<1x128xf32>
    %187 = arith.subf %185, %145 : vector<1x128xf32>
    %cst_56 = arith.constant 0.000000e+00 : f32
    %188 = vector.broadcast %cst_56 : f32 to vector<1x128xf32>
    %189 = arith.maximumf %187, %188 : vector<1x128xf32>
    %190 = arith.subf %185, %189 : vector<1x128xf32>
    %191 = arith.subf %190, %186 : vector<1x128xf32>
    %cst_57 = arith.constant 0.000000e+00 : f32
    %192 = vector.broadcast %cst_57 : f32 to vector<1x128xf32>
    %193 = arith.maximumf %191, %192 : vector<1x128xf32>
    %194 = arith.addf %186, %193 : vector<1x128xf32>
    %195 = vector.extract_strided_slice %72 {offsets = [2, 0], sizes = [1, 128], strides = [1, 1]} : vector<8x128xf32> to vector<1x128xf32>
    %196 = vector.extract_strided_slice %80 {offsets = [2, 0], sizes = [1, 128], strides = [1, 1]} : vector<8x128xf32> to vector<1x128xf32>
    %197 = arith.subf %195, %155 : vector<1x128xf32>
    %cst_58 = arith.constant 0.000000e+00 : f32
    %198 = vector.broadcast %cst_58 : f32 to vector<1x128xf32>
    %199 = arith.maximumf %197, %198 : vector<1x128xf32>
    %200 = arith.subf %195, %199 : vector<1x128xf32>
    %201 = arith.subf %200, %196 : vector<1x128xf32>
    %cst_59 = arith.constant 0.000000e+00 : f32
    %202 = vector.broadcast %cst_59 : f32 to vector<1x128xf32>
    %203 = arith.maximumf %201, %202 : vector<1x128xf32>
    %204 = arith.addf %196, %203 : vector<1x128xf32>
    %205 = vector.extract_strided_slice %74 {offsets = [2, 0], sizes = [1, 128], strides = [1, 1]} : vector<8x128xf32> to vector<1x128xf32>
    %206 = vector.extract_strided_slice %82 {offsets = [2, 0], sizes = [1, 128], strides = [1, 1]} : vector<8x128xf32> to vector<1x128xf32>
    %207 = arith.subf %205, %165 : vector<1x128xf32>
    %cst_60 = arith.constant 0.000000e+00 : f32
    %208 = vector.broadcast %cst_60 : f32 to vector<1x128xf32>
    %209 = arith.maximumf %207, %208 : vector<1x128xf32>
    %210 = arith.subf %205, %209 : vector<1x128xf32>
    %211 = arith.subf %210, %206 : vector<1x128xf32>
    %cst_61 = arith.constant 0.000000e+00 : f32
    %212 = vector.broadcast %cst_61 : f32 to vector<1x128xf32>
    %213 = arith.maximumf %211, %212 : vector<1x128xf32>
    %214 = arith.addf %206, %213 : vector<1x128xf32>
    %215 = vector.extract_strided_slice %76 {offsets = [2, 0], sizes = [1, 128], strides = [1, 1]} : vector<8x128xf32> to vector<1x128xf32>
    %216 = vector.extract_strided_slice %84 {offsets = [2, 0], sizes = [1, 128], strides = [1, 1]} : vector<8x128xf32> to vector<1x128xf32>
    %217 = arith.subf %215, %175 : vector<1x128xf32>
    %cst_62 = arith.constant 0.000000e+00 : f32
    %218 = vector.broadcast %cst_62 : f32 to vector<1x128xf32>
    %219 = arith.maximumf %217, %218 : vector<1x128xf32>
    %220 = arith.subf %215, %219 : vector<1x128xf32>
    %221 = arith.subf %220, %216 : vector<1x128xf32>
    %cst_63 = arith.constant 0.000000e+00 : f32
    %222 = vector.broadcast %cst_63 : f32 to vector<1x128xf32>
    %223 = arith.maximumf %221, %222 : vector<1x128xf32>
    %224 = arith.addf %216, %223 : vector<1x128xf32>
    %225 = vector.extract_strided_slice %86 {offsets = [2, 0], sizes = [1, 128], strides = [1, 1]} : vector<8x128xf32> to vector<1x128xf32>
    %226 = arith.mulf %55, %194 : vector<1x128xf32>
    %227 = arith.addf %225, %226 : vector<1x128xf32>
    %228 = arith.mulf %57, %204 : vector<1x128xf32>
    %229 = arith.addf %227, %228 : vector<1x128xf32>
    %230 = arith.mulf %59, %214 : vector<1x128xf32>
    %231 = arith.addf %229, %230 : vector<1x128xf32>
    %232 = arith.mulf %61, %224 : vector<1x128xf32>
    %233 = arith.addf %231, %232 : vector<1x128xf32>
    %234 = vector.extract_strided_slice %70 {offsets = [3, 0], sizes = [1, 128], strides = [1, 1]} : vector<8x128xf32> to vector<1x128xf32>
    %235 = vector.extract_strided_slice %78 {offsets = [3, 0], sizes = [1, 128], strides = [1, 1]} : vector<8x128xf32> to vector<1x128xf32>
    %236 = arith.subf %234, %194 : vector<1x128xf32>
    %cst_64 = arith.constant 0.000000e+00 : f32
    %237 = vector.broadcast %cst_64 : f32 to vector<1x128xf32>
    %238 = arith.maximumf %236, %237 : vector<1x128xf32>
    %239 = arith.subf %234, %238 : vector<1x128xf32>
    %240 = arith.subf %239, %235 : vector<1x128xf32>
    %cst_65 = arith.constant 0.000000e+00 : f32
    %241 = vector.broadcast %cst_65 : f32 to vector<1x128xf32>
    %242 = arith.maximumf %240, %241 : vector<1x128xf32>
    %243 = arith.addf %235, %242 : vector<1x128xf32>
    %244 = vector.extract_strided_slice %72 {offsets = [3, 0], sizes = [1, 128], strides = [1, 1]} : vector<8x128xf32> to vector<1x128xf32>
    %245 = vector.extract_strided_slice %80 {offsets = [3, 0], sizes = [1, 128], strides = [1, 1]} : vector<8x128xf32> to vector<1x128xf32>
    %246 = arith.subf %244, %204 : vector<1x128xf32>
    %cst_66 = arith.constant 0.000000e+00 : f32
    %247 = vector.broadcast %cst_66 : f32 to vector<1x128xf32>
    %248 = arith.maximumf %246, %247 : vector<1x128xf32>
    %249 = arith.subf %244, %248 : vector<1x128xf32>
    %250 = arith.subf %249, %245 : vector<1x128xf32>
    %cst_67 = arith.constant 0.000000e+00 : f32
    %251 = vector.broadcast %cst_67 : f32 to vector<1x128xf32>
    %252 = arith.maximumf %250, %251 : vector<1x128xf32>
    %253 = arith.addf %245, %252 : vector<1x128xf32>
    %254 = vector.extract_strided_slice %74 {offsets = [3, 0], sizes = [1, 128], strides = [1, 1]} : vector<8x128xf32> to vector<1x128xf32>
    %255 = vector.extract_strided_slice %82 {offsets = [3, 0], sizes = [1, 128], strides = [1, 1]} : vector<8x128xf32> to vector<1x128xf32>
    %256 = arith.subf %254, %214 : vector<1x128xf32>
    %cst_68 = arith.constant 0.000000e+00 : f32
    %257 = vector.broadcast %cst_68 : f32 to vector<1x128xf32>
    %258 = arith.maximumf %256, %257 : vector<1x128xf32>
    %259 = arith.subf %254, %258 : vector<1x128xf32>
    %260 = arith.subf %259, %255 : vector<1x128xf32>
    %cst_69 = arith.constant 0.000000e+00 : f32
    %261 = vector.broadcast %cst_69 : f32 to vector<1x128xf32>
    %262 = arith.maximumf %260, %261 : vector<1x128xf32>
    %263 = arith.addf %255, %262 : vector<1x128xf32>
    %264 = vector.extract_strided_slice %76 {offsets = [3, 0], sizes = [1, 128], strides = [1, 1]} : vector<8x128xf32> to vector<1x128xf32>
    %265 = vector.extract_strided_slice %84 {offsets = [3, 0], sizes = [1, 128], strides = [1, 1]} : vector<8x128xf32> to vector<1x128xf32>
    %266 = arith.subf %264, %224 : vector<1x128xf32>
    %cst_70 = arith.constant 0.000000e+00 : f32
    %267 = vector.broadcast %cst_70 : f32 to vector<1x128xf32>
    %268 = arith.maximumf %266, %267 : vector<1x128xf32>
    %269 = arith.subf %264, %268 : vector<1x128xf32>
    %270 = arith.subf %269, %265 : vector<1x128xf32>
    %cst_71 = arith.constant 0.000000e+00 : f32
    %271 = vector.broadcast %cst_71 : f32 to vector<1x128xf32>
    %272 = arith.maximumf %270, %271 : vector<1x128xf32>
    %273 = arith.addf %265, %272 : vector<1x128xf32>
    %274 = vector.extract_strided_slice %86 {offsets = [3, 0], sizes = [1, 128], strides = [1, 1]} : vector<8x128xf32> to vector<1x128xf32>
    %275 = arith.mulf %55, %243 : vector<1x128xf32>
    %276 = arith.addf %274, %275 : vector<1x128xf32>
    %277 = arith.mulf %57, %253 : vector<1x128xf32>
    %278 = arith.addf %276, %277 : vector<1x128xf32>
    %279 = arith.mulf %59, %263 : vector<1x128xf32>
    %280 = arith.addf %278, %279 : vector<1x128xf32>
    %281 = arith.mulf %61, %273 : vector<1x128xf32>
    %282 = arith.addf %280, %281 : vector<1x128xf32>
    %283 = vector.extract_strided_slice %70 {offsets = [4, 0], sizes = [1, 128], strides = [1, 1]} : vector<8x128xf32> to vector<1x128xf32>
    %284 = vector.extract_strided_slice %78 {offsets = [4, 0], sizes = [1, 128], strides = [1, 1]} : vector<8x128xf32> to vector<1x128xf32>
    %285 = arith.subf %283, %243 : vector<1x128xf32>
    %cst_72 = arith.constant 0.000000e+00 : f32
    %286 = vector.broadcast %cst_72 : f32 to vector<1x128xf32>
    %287 = arith.maximumf %285, %286 : vector<1x128xf32>
    %288 = arith.subf %283, %287 : vector<1x128xf32>
    %289 = arith.subf %288, %284 : vector<1x128xf32>
    %cst_73 = arith.constant 0.000000e+00 : f32
    %290 = vector.broadcast %cst_73 : f32 to vector<1x128xf32>
    %291 = arith.maximumf %289, %290 : vector<1x128xf32>
    %292 = arith.addf %284, %291 : vector<1x128xf32>
    %293 = vector.extract_strided_slice %72 {offsets = [4, 0], sizes = [1, 128], strides = [1, 1]} : vector<8x128xf32> to vector<1x128xf32>
    %294 = vector.extract_strided_slice %80 {offsets = [4, 0], sizes = [1, 128], strides = [1, 1]} : vector<8x128xf32> to vector<1x128xf32>
    %295 = arith.subf %293, %253 : vector<1x128xf32>
    %cst_74 = arith.constant 0.000000e+00 : f32
    %296 = vector.broadcast %cst_74 : f32 to vector<1x128xf32>
    %297 = arith.maximumf %295, %296 : vector<1x128xf32>
    %298 = arith.subf %293, %297 : vector<1x128xf32>
    %299 = arith.subf %298, %294 : vector<1x128xf32>
    %cst_75 = arith.constant 0.000000e+00 : f32
    %300 = vector.broadcast %cst_75 : f32 to vector<1x128xf32>
    %301 = arith.maximumf %299, %300 : vector<1x128xf32>
    %302 = arith.addf %294, %301 : vector<1x128xf32>
    %303 = vector.extract_strided_slice %74 {offsets = [4, 0], sizes = [1, 128], strides = [1, 1]} : vector<8x128xf32> to vector<1x128xf32>
    %304 = vector.extract_strided_slice %82 {offsets = [4, 0], sizes = [1, 128], strides = [1, 1]} : vector<8x128xf32> to vector<1x128xf32>
    %305 = arith.subf %303, %263 : vector<1x128xf32>
    %cst_76 = arith.constant 0.000000e+00 : f32
    %306 = vector.broadcast %cst_76 : f32 to vector<1x128xf32>
    %307 = arith.maximumf %305, %306 : vector<1x128xf32>
    %308 = arith.subf %303, %307 : vector<1x128xf32>
    %309 = arith.subf %308, %304 : vector<1x128xf32>
    %cst_77 = arith.constant 0.000000e+00 : f32
    %310 = vector.broadcast %cst_77 : f32 to vector<1x128xf32>
    %311 = arith.maximumf %309, %310 : vector<1x128xf32>
    %312 = arith.addf %304, %311 : vector<1x128xf32>
    %313 = vector.extract_strided_slice %76 {offsets = [4, 0], sizes = [1, 128], strides = [1, 1]} : vector<8x128xf32> to vector<1x128xf32>
    %314 = vector.extract_strided_slice %84 {offsets = [4, 0], sizes = [1, 128], strides = [1, 1]} : vector<8x128xf32> to vector<1x128xf32>
    %315 = arith.subf %313, %273 : vector<1x128xf32>
    %cst_78 = arith.constant 0.000000e+00 : f32
    %316 = vector.broadcast %cst_78 : f32 to vector<1x128xf32>
    %317 = arith.maximumf %315, %316 : vector<1x128xf32>
    %318 = arith.subf %313, %317 : vector<1x128xf32>
    %319 = arith.subf %318, %314 : vector<1x128xf32>
    %cst_79 = arith.constant 0.000000e+00 : f32
    %320 = vector.broadcast %cst_79 : f32 to vector<1x128xf32>
    %321 = arith.maximumf %319, %320 : vector<1x128xf32>
    %322 = arith.addf %314, %321 : vector<1x128xf32>
    %323 = vector.extract_strided_slice %86 {offsets = [4, 0], sizes = [1, 128], strides = [1, 1]} : vector<8x128xf32> to vector<1x128xf32>
    %324 = arith.mulf %55, %292 : vector<1x128xf32>
    %325 = arith.addf %323, %324 : vector<1x128xf32>
    %326 = arith.mulf %57, %302 : vector<1x128xf32>
    %327 = arith.addf %325, %326 : vector<1x128xf32>
    %328 = arith.mulf %59, %312 : vector<1x128xf32>
    %329 = arith.addf %327, %328 : vector<1x128xf32>
    %330 = arith.mulf %61, %322 : vector<1x128xf32>
    %331 = arith.addf %329, %330 : vector<1x128xf32>
    %332 = vector.extract_strided_slice %70 {offsets = [5, 0], sizes = [1, 128], strides = [1, 1]} : vector<8x128xf32> to vector<1x128xf32>
    %333 = vector.extract_strided_slice %78 {offsets = [5, 0], sizes = [1, 128], strides = [1, 1]} : vector<8x128xf32> to vector<1x128xf32>
    %334 = arith.subf %332, %292 : vector<1x128xf32>
    %cst_80 = arith.constant 0.000000e+00 : f32
    %335 = vector.broadcast %cst_80 : f32 to vector<1x128xf32>
    %336 = arith.maximumf %334, %335 : vector<1x128xf32>
    %337 = arith.subf %332, %336 : vector<1x128xf32>
    %338 = arith.subf %337, %333 : vector<1x128xf32>
    %cst_81 = arith.constant 0.000000e+00 : f32
    %339 = vector.broadcast %cst_81 : f32 to vector<1x128xf32>
    %340 = arith.maximumf %338, %339 : vector<1x128xf32>
    %341 = arith.addf %333, %340 : vector<1x128xf32>
    %342 = vector.extract_strided_slice %72 {offsets = [5, 0], sizes = [1, 128], strides = [1, 1]} : vector<8x128xf32> to vector<1x128xf32>
    %343 = vector.extract_strided_slice %80 {offsets = [5, 0], sizes = [1, 128], strides = [1, 1]} : vector<8x128xf32> to vector<1x128xf32>
    %344 = arith.subf %342, %302 : vector<1x128xf32>
    %cst_82 = arith.constant 0.000000e+00 : f32
    %345 = vector.broadcast %cst_82 : f32 to vector<1x128xf32>
    %346 = arith.maximumf %344, %345 : vector<1x128xf32>
    %347 = arith.subf %342, %346 : vector<1x128xf32>
    %348 = arith.subf %347, %343 : vector<1x128xf32>
    %cst_83 = arith.constant 0.000000e+00 : f32
    %349 = vector.broadcast %cst_83 : f32 to vector<1x128xf32>
    %350 = arith.maximumf %348, %349 : vector<1x128xf32>
    %351 = arith.addf %343, %350 : vector<1x128xf32>
    %352 = vector.extract_strided_slice %74 {offsets = [5, 0], sizes = [1, 128], strides = [1, 1]} : vector<8x128xf32> to vector<1x128xf32>
    %353 = vector.extract_strided_slice %82 {offsets = [5, 0], sizes = [1, 128], strides = [1, 1]} : vector<8x128xf32> to vector<1x128xf32>
    %354 = arith.subf %352, %312 : vector<1x128xf32>
    %cst_84 = arith.constant 0.000000e+00 : f32
    %355 = vector.broadcast %cst_84 : f32 to vector<1x128xf32>
    %356 = arith.maximumf %354, %355 : vector<1x128xf32>
    %357 = arith.subf %352, %356 : vector<1x128xf32>
    %358 = arith.subf %357, %353 : vector<1x128xf32>
    %cst_85 = arith.constant 0.000000e+00 : f32
    %359 = vector.broadcast %cst_85 : f32 to vector<1x128xf32>
    %360 = arith.maximumf %358, %359 : vector<1x128xf32>
    %361 = arith.addf %353, %360 : vector<1x128xf32>
    %362 = vector.extract_strided_slice %76 {offsets = [5, 0], sizes = [1, 128], strides = [1, 1]} : vector<8x128xf32> to vector<1x128xf32>
    %363 = vector.extract_strided_slice %84 {offsets = [5, 0], sizes = [1, 128], strides = [1, 1]} : vector<8x128xf32> to vector<1x128xf32>
    %364 = arith.subf %362, %322 : vector<1x128xf32>
    %cst_86 = arith.constant 0.000000e+00 : f32
    %365 = vector.broadcast %cst_86 : f32 to vector<1x128xf32>
    %366 = arith.maximumf %364, %365 : vector<1x128xf32>
    %367 = arith.subf %362, %366 : vector<1x128xf32>
    %368 = arith.subf %367, %363 : vector<1x128xf32>
    %cst_87 = arith.constant 0.000000e+00 : f32
    %369 = vector.broadcast %cst_87 : f32 to vector<1x128xf32>
    %370 = arith.maximumf %368, %369 : vector<1x128xf32>
    %371 = arith.addf %363, %370 : vector<1x128xf32>
    %372 = vector.extract_strided_slice %86 {offsets = [5, 0], sizes = [1, 128], strides = [1, 1]} : vector<8x128xf32> to vector<1x128xf32>
    %373 = arith.mulf %55, %341 : vector<1x128xf32>
    %374 = arith.addf %372, %373 : vector<1x128xf32>
    %375 = arith.mulf %57, %351 : vector<1x128xf32>
    %376 = arith.addf %374, %375 : vector<1x128xf32>
    %377 = arith.mulf %59, %361 : vector<1x128xf32>
    %378 = arith.addf %376, %377 : vector<1x128xf32>
    %379 = arith.mulf %61, %371 : vector<1x128xf32>
    %380 = arith.addf %378, %379 : vector<1x128xf32>
    %381 = vector.extract_strided_slice %70 {offsets = [6, 0], sizes = [1, 128], strides = [1, 1]} : vector<8x128xf32> to vector<1x128xf32>
    %382 = vector.extract_strided_slice %78 {offsets = [6, 0], sizes = [1, 128], strides = [1, 1]} : vector<8x128xf32> to vector<1x128xf32>
    %383 = arith.subf %381, %341 : vector<1x128xf32>
    %cst_88 = arith.constant 0.000000e+00 : f32
    %384 = vector.broadcast %cst_88 : f32 to vector<1x128xf32>
    %385 = arith.maximumf %383, %384 : vector<1x128xf32>
    %386 = arith.subf %381, %385 : vector<1x128xf32>
    %387 = arith.subf %386, %382 : vector<1x128xf32>
    %cst_89 = arith.constant 0.000000e+00 : f32
    %388 = vector.broadcast %cst_89 : f32 to vector<1x128xf32>
    %389 = arith.maximumf %387, %388 : vector<1x128xf32>
    %390 = arith.addf %382, %389 : vector<1x128xf32>
    %391 = vector.extract_strided_slice %72 {offsets = [6, 0], sizes = [1, 128], strides = [1, 1]} : vector<8x128xf32> to vector<1x128xf32>
    %392 = vector.extract_strided_slice %80 {offsets = [6, 0], sizes = [1, 128], strides = [1, 1]} : vector<8x128xf32> to vector<1x128xf32>
    %393 = arith.subf %391, %351 : vector<1x128xf32>
    %cst_90 = arith.constant 0.000000e+00 : f32
    %394 = vector.broadcast %cst_90 : f32 to vector<1x128xf32>
    %395 = arith.maximumf %393, %394 : vector<1x128xf32>
    %396 = arith.subf %391, %395 : vector<1x128xf32>
    %397 = arith.subf %396, %392 : vector<1x128xf32>
    %cst_91 = arith.constant 0.000000e+00 : f32
    %398 = vector.broadcast %cst_91 : f32 to vector<1x128xf32>
    %399 = arith.maximumf %397, %398 : vector<1x128xf32>
    %400 = arith.addf %392, %399 : vector<1x128xf32>
    %401 = vector.extract_strided_slice %74 {offsets = [6, 0], sizes = [1, 128], strides = [1, 1]} : vector<8x128xf32> to vector<1x128xf32>
    %402 = vector.extract_strided_slice %82 {offsets = [6, 0], sizes = [1, 128], strides = [1, 1]} : vector<8x128xf32> to vector<1x128xf32>
    %403 = arith.subf %401, %361 : vector<1x128xf32>
    %cst_92 = arith.constant 0.000000e+00 : f32
    %404 = vector.broadcast %cst_92 : f32 to vector<1x128xf32>
    %405 = arith.maximumf %403, %404 : vector<1x128xf32>
    %406 = arith.subf %401, %405 : vector<1x128xf32>
    %407 = arith.subf %406, %402 : vector<1x128xf32>
    %cst_93 = arith.constant 0.000000e+00 : f32
    %408 = vector.broadcast %cst_93 : f32 to vector<1x128xf32>
    %409 = arith.maximumf %407, %408 : vector<1x128xf32>
    %410 = arith.addf %402, %409 : vector<1x128xf32>
    %411 = vector.extract_strided_slice %76 {offsets = [6, 0], sizes = [1, 128], strides = [1, 1]} : vector<8x128xf32> to vector<1x128xf32>
    %412 = vector.extract_strided_slice %84 {offsets = [6, 0], sizes = [1, 128], strides = [1, 1]} : vector<8x128xf32> to vector<1x128xf32>
    %413 = arith.subf %411, %371 : vector<1x128xf32>
    %cst_94 = arith.constant 0.000000e+00 : f32
    %414 = vector.broadcast %cst_94 : f32 to vector<1x128xf32>
    %415 = arith.maximumf %413, %414 : vector<1x128xf32>
    %416 = arith.subf %411, %415 : vector<1x128xf32>
    %417 = arith.subf %416, %412 : vector<1x128xf32>
    %cst_95 = arith.constant 0.000000e+00 : f32
    %418 = vector.broadcast %cst_95 : f32 to vector<1x128xf32>
    %419 = arith.maximumf %417, %418 : vector<1x128xf32>
    %420 = arith.addf %412, %419 : vector<1x128xf32>
    %421 = vector.extract_strided_slice %86 {offsets = [6, 0], sizes = [1, 128], strides = [1, 1]} : vector<8x128xf32> to vector<1x128xf32>
    %422 = arith.mulf %55, %390 : vector<1x128xf32>
    %423 = arith.addf %421, %422 : vector<1x128xf32>
    %424 = arith.mulf %57, %400 : vector<1x128xf32>
    %425 = arith.addf %423, %424 : vector<1x128xf32>
    %426 = arith.mulf %59, %410 : vector<1x128xf32>
    %427 = arith.addf %425, %426 : vector<1x128xf32>
    %428 = arith.mulf %61, %420 : vector<1x128xf32>
    %429 = arith.addf %427, %428 : vector<1x128xf32>
    %430 = vector.extract_strided_slice %70 {offsets = [7, 0], sizes = [1, 128], strides = [1, 1]} : vector<8x128xf32> to vector<1x128xf32>
    %431 = vector.extract_strided_slice %78 {offsets = [7, 0], sizes = [1, 128], strides = [1, 1]} : vector<8x128xf32> to vector<1x128xf32>
    %432 = arith.subf %430, %390 : vector<1x128xf32>
    %cst_96 = arith.constant 0.000000e+00 : f32
    %433 = vector.broadcast %cst_96 : f32 to vector<1x128xf32>
    %434 = arith.maximumf %432, %433 : vector<1x128xf32>
    %435 = arith.subf %430, %434 : vector<1x128xf32>
    %436 = arith.subf %435, %431 : vector<1x128xf32>
    %cst_97 = arith.constant 0.000000e+00 : f32
    %437 = vector.broadcast %cst_97 : f32 to vector<1x128xf32>
    %438 = arith.maximumf %436, %437 : vector<1x128xf32>
    %439 = arith.addf %431, %438 : vector<1x128xf32>
    %440 = vector.extract_strided_slice %72 {offsets = [7, 0], sizes = [1, 128], strides = [1, 1]} : vector<8x128xf32> to vector<1x128xf32>
    %441 = vector.extract_strided_slice %80 {offsets = [7, 0], sizes = [1, 128], strides = [1, 1]} : vector<8x128xf32> to vector<1x128xf32>
    %442 = arith.subf %440, %400 : vector<1x128xf32>
    %cst_98 = arith.constant 0.000000e+00 : f32
    %443 = vector.broadcast %cst_98 : f32 to vector<1x128xf32>
    %444 = arith.maximumf %442, %443 : vector<1x128xf32>
    %445 = arith.subf %440, %444 : vector<1x128xf32>
    %446 = arith.subf %445, %441 : vector<1x128xf32>
    %cst_99 = arith.constant 0.000000e+00 : f32
    %447 = vector.broadcast %cst_99 : f32 to vector<1x128xf32>
    %448 = arith.maximumf %446, %447 : vector<1x128xf32>
    %449 = arith.addf %441, %448 : vector<1x128xf32>
    %450 = vector.extract_strided_slice %74 {offsets = [7, 0], sizes = [1, 128], strides = [1, 1]} : vector<8x128xf32> to vector<1x128xf32>
    %451 = vector.extract_strided_slice %82 {offsets = [7, 0], sizes = [1, 128], strides = [1, 1]} : vector<8x128xf32> to vector<1x128xf32>
    %452 = arith.subf %450, %410 : vector<1x128xf32>
    %cst_100 = arith.constant 0.000000e+00 : f32
    %453 = vector.broadcast %cst_100 : f32 to vector<1x128xf32>
    %454 = arith.maximumf %452, %453 : vector<1x128xf32>
    %455 = arith.subf %450, %454 : vector<1x128xf32>
    %456 = arith.subf %455, %451 : vector<1x128xf32>
    %cst_101 = arith.constant 0.000000e+00 : f32
    %457 = vector.broadcast %cst_101 : f32 to vector<1x128xf32>
    %458 = arith.maximumf %456, %457 : vector<1x128xf32>
    %459 = arith.addf %451, %458 : vector<1x128xf32>
    %460 = vector.extract_strided_slice %76 {offsets = [7, 0], sizes = [1, 128], strides = [1, 1]} : vector<8x128xf32> to vector<1x128xf32>
    %461 = vector.extract_strided_slice %84 {offsets = [7, 0], sizes = [1, 128], strides = [1, 1]} : vector<8x128xf32> to vector<1x128xf32>
    %462 = arith.subf %460, %420 : vector<1x128xf32>
    %cst_102 = arith.constant 0.000000e+00 : f32
    %463 = vector.broadcast %cst_102 : f32 to vector<1x128xf32>
    %464 = arith.maximumf %462, %463 : vector<1x128xf32>
    %465 = arith.subf %460, %464 : vector<1x128xf32>
    %466 = arith.subf %465, %461 : vector<1x128xf32>
    %cst_103 = arith.constant 0.000000e+00 : f32
    %467 = vector.broadcast %cst_103 : f32 to vector<1x128xf32>
    %468 = arith.maximumf %466, %467 : vector<1x128xf32>
    %469 = arith.addf %461, %468 : vector<1x128xf32>
    %470 = vector.extract_strided_slice %86 {offsets = [7, 0], sizes = [1, 128], strides = [1, 1]} : vector<8x128xf32> to vector<1x128xf32>
    %471 = arith.mulf %55, %439 : vector<1x128xf32>
    %472 = arith.addf %470, %471 : vector<1x128xf32>
    %473 = arith.mulf %57, %449 : vector<1x128xf32>
    %474 = arith.addf %472, %473 : vector<1x128xf32>
    %475 = arith.mulf %59, %459 : vector<1x128xf32>
    %476 = arith.addf %474, %475 : vector<1x128xf32>
    %477 = arith.mulf %61, %469 : vector<1x128xf32>
    %478 = arith.addf %476, %477 : vector<1x128xf32>
    %479 = tpu.concatenate %135, %184, %233, %282, %331, %380, %429, %478 in 0 : vector<1x128xf32>, vector<1x128xf32>, vector<1x128xf32>, vector<1x128xf32>, vector<1x128xf32>, vector<1x128xf32>, vector<1x128xf32>, vector<1x128xf32> -> vector<8x128xf32>
    %480 = arith.index_cast %68 : i32 to index
    %c0_104 = arith.constant 0 : index
    %481 = vector.load %arg6[%480, %c0_104] : memref<8x128xf32, #tpu.memory_space<vmem>>, vector<8x128xf32>
    tpu.vector_store %arg6[%480, %c0_104], %479 {strides = array<i32>} : memref<8x128xf32, #tpu.memory_space<vmem>>, vector<8x128xf32>,
    %c1_i32 = arith.constant 1 : i32
    %482 = tpu.concatenate %439, %449, %459, %469 in 0 : vector<1x128xf32>, vector<1x128xf32>, vector<1x128xf32>, vector<1x128xf32> -> vector<4x128xf32>
    %c0_105 = arith.constant 0 : index
    %c0_106 = arith.constant 0 : index
    %483 = vector.load %arg17[%c0_105, %c0_106] : memref<4x128xf32, #tpu.memory_space<vmem>>, vector<4x128xf32>
    tpu.vector_store %arg17[%c0_105, %c0_106], %482 {strides = array<i32>} : memref<4x128xf32, #tpu.memory_space<vmem>>, vector<4x128xf32>,
    %c0_i32_107 = arith.constant 0 : i32
    %484 = arith.cmpi eq, %arg1, %c0_i32_107 : i32
    %485 = arith.extui %484 : i1 to i32
    %c0_i32_108 = arith.constant 0 : i32
    %486 = arith.cmpi ne, %485, %c0_i32_108 : i32
    scf.if %486 {
      %c0_109 = arith.constant 0 : index
      %c0_110 = arith.constant 0 : index
      %487 = vector.load %arg17[%c0_109, %c0_110] : memref<4x128xf32, #tpu.memory_space<vmem>>, vector<4x128xf32>
      %c0_111 = arith.constant 0 : index
      %c0_112 = arith.constant 0 : index
      %488 = vector.load %arg7[%c0_111, %c0_112] : memref<4x128xf32, #tpu.memory_space<vmem>>, vector<4x128xf32>
      tpu.vector_store %arg7[%c0_111, %c0_112], %487 {strides = array<i32>} : memref<4x128xf32, #tpu.memory_space<vmem>>, vector<4x128xf32>,
    } else {
    }
    return
  }
  func.func @transform_0(%arg0: i32, %arg1: i32) -> i32 {
    %c0_i32 = arith.constant 0 : i32
    %c0_i32_0 = arith.constant 0 : i32
    return %c0_i32 : i32
  }
  func.func @transform_1(%arg0: i32, %arg1: i32) -> (i32, i32) {
    %c0_i32 = arith.constant 0 : i32
    return %arg1, %arg0 : i32, i32
  }
  func.func @transform_2(%arg0: i32, %arg1: i32) -> (i32, i32) {
    %c0_i32 = arith.constant 0 : i32
    return %arg1, %arg0 : i32, i32
  }
  func.func @transform_3(%arg0: i32, %arg1: i32) -> (i32, i32) {
    %c0_i32 = arith.constant 0 : i32
    %c0_i32_0 = arith.constant 0 : i32
    return %c0_i32, %arg0 : i32, i32
  }
  func.func @transform_4(%arg0: i32, %arg1: i32) -> (i32, i32) {
    %c0_i32 = arith.constant 0 : i32
    return %arg1, %arg0 : i32, i32
  }
  func.func @transform_5(%arg0: i32, %arg1: i32) -> (i32, i32) {
    %c0_i32 = arith.constant 0 : i32
    %c0_i32_0 = arith.constant 0 : i32
    return %c0_i32, %arg0 : i32, i32
  }
}

</mosaic_0001>

<llo_original>
// kernel: tpu_custom_call.1
$region0: #{tpu_custom_call.1}
  #allocation0 [shape = 'u32[]', space=smem, size = 0x4, offset = 0x4, fixed_abs, tag = 'smem constant byte address 0x4 - core index']
  #allocation1 [shape = 'u32[72,128]{1,0:T(1,128)}', space=vmem, size = 0x9000, scoped, tag = 'internal scratch']
  #allocation2 [shape = 'f32[8,128]{1,0:T(8,128)}', space=vmem, size = 0x1000, scoped, tag = 'scratch operand']
  #allocation3 [shape = 'f32[8,128]{1,0:T(8,128)}', space=vmem, size = 0x1000, scoped, tag = 'scratch operand']
  #allocation4 [shape = 'f32[8,128]{1,0:T(8,128)}', space=vmem, size = 0x1000, scoped, tag = 'scratch operand']
  #allocation5 [shape = 'f32[8,128]{1,0:T(8,128)}', space=vmem, size = 0x1000, scoped, tag = 'scratch operand']
  #allocation6 [shape = 'f32[8,128]{1,0:T(8,128)}', space=vmem, size = 0x1000, scoped, tag = 'scratch operand']
  #allocation7 [shape = 'f32[8,128]{1,0:T(8,128)}', space=vmem, size = 0x1000, scoped, tag = 'scratch operand']
  #allocation8 [shape = 'f32[8,128]{1,0:T(8,128)}', space=vmem, size = 0x1000, scoped, tag = 'scratch operand']
  #allocation9 [shape = 'f32[8,128]{1,0:T(8,128)}', space=vmem, size = 0x1000, scoped, tag = 'scratch operand']
  #allocation10 [shape = 'f32[8,128]{1,0:T(8,128)}', space=vmem, size = 0x1000, scoped, tag = 'scratch operand']
  #allocation11 [shape = 'f32[4,128]{1,0:T(4,128)}', space=vmem, size = 0x800, scoped, tag = 'scratch operand']
  %s0 = inlined_call_operand.hbm [shape: f32[11], index: 0, kind: input, shape index: {}]
  %s1 = inlined_call_operand.hbm [shape: f32[8,128], index: 1, kind: input, shape index: {}]
  %s2 = inlined_call_operand.hbm [shape: f32[8,128], index: 2, kind: input, shape index: {}]
  %s3 = inlined_call_operand.hbm [shape: f32[4,128], index: 3, kind: input, shape index: {}]
  %s4 = inlined_call_operand.hbm [shape: f32[8,128], index: 4, kind: output, shape index: {0}]
  %s5 = inlined_call_operand.hbm [shape: f32[4,128], index: 5, kind: output, shape index: {1}]
  %6 = xla_tuple %s4, %s5
  %s7 = sld [smem:[#allocation0]]
  $region58: #{tpu_custom_call.1} parent=0
    _
  %s9 = ssub.s32 1, %s7
  %s10 = scalar_select 0, %s9, %s7
  $region1: #{tpu_custom_call.1} parent=0
    #allocation12 [shape = 'u8[512]{0}', space=smem, size = 0x200, scoped, tag = 'input window, operand 0, single buffered']
    #allocation13 [shape = 's32[1]{0}', space=sflag, size = 0x4, scoped, tag = 'scoped memory for tpu_custom_call.1']
    #allocation14 [shape = 's32[1]{0}', space=sflag, size = 0x4, scoped, tag = 'scoped memory for tpu_custom_call.1']
    #allocation15 [shape = 's32[1]{0}', space=sflag, size = 0x4, scoped, tag = 'scoped memory for tpu_custom_call.1']
    #allocation16 [shape = 'u8[4096]{0}', space=vmem, size = 0x1000, scoped, tag = 'input window, operand 1, single buffered']
    #allocation17 [shape = 'u8[4096]{0}', space=vmem, size = 0x1000, scoped, tag = 'input window, operand 2, single buffered']
    #allocation18 [shape = 's32[1]{0}', space=sflag, size = 0x4, scoped, tag = 'scoped memory for tpu_custom_call.1']
    #allocation19 [shape = 'u8[2048]{0}', space=vmem, size = 0x800, scoped, tag = 'input window, operand 3, single buffered']
    #allocation20 [shape = 'u8[4096]{0}', space=vmem, size = 0x1000, scoped, tag = 'output window, operand 0, single buffered']
    #allocation21 [shape = 'u8[2048]{0}', space=vmem, size = 0x800, scoped, tag = 'output window, operand 1, single buffered']
    #allocation22 [shape = 's32[1]{0}', space=sflag, size = 0x4, scoped, tag = 'scoped memory for tpu_custom_call.1']
    %11 = vsyncpa [#allocation15], 0
    %12 = vsyncpa [#allocation13], 0
    %13 = vsyncpa [#allocation18], 0
    %14 = vsyncpa [#allocation14], 0
    %15 = vsyncpa [#allocation22], 0
    // Predicated region
    $region2: #{tpu_custom_call.1} parent=1 // pred_check
      _
    $region3: #{tpu_custom_call.1} parent=1 // pred_check_branch
      %17 = sbr.rel (0) target = $region5
    $region4: #{tpu_custom_call.1} parent=1 // pred_region
      %19 = vsyncadd [#allocation15], 0
      %s21 = sshll.u32 %s0, 4
      %s22 = int_to_ptr.hbm [resolvable:$true] %s21
      %24 = dma.hbm_to_smem %s22, 16, [#allocation12], [#allocation15]
    $region5: #{tpu_custom_call.1} parent=1 // pred_fallthru
      _
    // Predicated region
    $region6: #{tpu_custom_call.1} parent=1 // pred_check
      _
    $region7: #{tpu_custom_call.1} parent=1 // pred_check_branch
      %26 = sbr.rel (0) target = $region9
    $region8: #{tpu_custom_call.1} parent=1 // pred_region
      %28 = vsyncadd [#allocation13], 0
      %s30 = sshll.u32 %s1, 4
      %s31 = int_to_ptr.hbm [resolvable:$true] %s30
      %s32 = sshll.u32 [#allocation16], 4
      %s33 = int_to_ptr.vmem [resolvable:$true] %s32
      %35 = dma.hbm_to_vmem [thread:$0]  %s31, 128, %s33, [#allocation13]
    $region9: #{tpu_custom_call.1} parent=1 // pred_fallthru
      _
    // Predicated region
    $region10: #{tpu_custom_call.1} parent=1 // pred_check
      _
    $region11: #{tpu_custom_call.1} parent=1 // pred_check_branch
      %37 = sbr.rel (0) target = $region13
    $region12: #{tpu_custom_call.1} parent=1 // pred_region
      %39 = vsyncadd [#allocation18], 0
      %s41 = sshll.u32 %s2, 4
      %s42 = int_to_ptr.hbm [resolvable:$true] %s41
      %s43 = sshll.u32 [#allocation17], 4
      %s44 = int_to_ptr.vmem [resolvable:$true] %s43
      %46 = dma.hbm_to_vmem [thread:$0]  %s42, 128, %s44, [#allocation18]
    $region13: #{tpu_custom_call.1} parent=1 // pred_fallthru
      _
    // Predicated region
    $region14: #{tpu_custom_call.1} parent=1 // pred_check
      _
    $region15: #{tpu_custom_call.1} parent=1 // pred_check_branch
      %48 = sbr.rel (0) target = $region17
    $region16: #{tpu_custom_call.1} parent=1 // pred_region
      %50 = vsyncadd [#allocation18], 0
      %s52 = sshll.u32 %s3, 4
      %s53 = int_to_ptr.hbm [resolvable:$true] %s52
      %s54 = sshll.u32 [#allocation19], 4
      %s55 = int_to_ptr.vmem [resolvable:$true] %s54
      %57 = dma.hbm_to_vmem [thread:$0]  %s53, 64, %s55, [#allocation18]
    $region17: #{tpu_custom_call.1} parent=1 // pred_fallthru
      _
    // Predicated region
    $region18: #{tpu_custom_call.1} parent=1 // pred_check
      _
    $region19: #{tpu_custom_call.1} parent=1 // pred_check_branch
      %59 = sbr.rel (0) target = $region21
    $region20: #{tpu_custom_call.1} parent=1 // pred_region
      %61 = dma.done [#allocation15], 16
    $region21: #{tpu_custom_call.1} parent=1 // pred_fallthru
      _
    // Predicated region
    $region22: #{tpu_custom_call.1} parent=1 // pred_check
      _
    $region23: #{tpu_custom_call.1} parent=1 // pred_check_branch
      %63 = sbr.rel (0) target = $region25
    $region24: #{tpu_custom_call.1} parent=1 // pred_region
      %65 = dma.done [#allocation13], 128
    $region25: #{tpu_custom_call.1} parent=1 // pred_fallthru
      _
    // Predicated region
    $region26: #{tpu_custom_call.1} parent=1 // pred_check
      _
    $region27: #{tpu_custom_call.1} parent=1 // pred_check_branch
      %67 = sbr.rel (0) target = $region29
    $region28: #{tpu_custom_call.1} parent=1 // pred_region
      %69 = dma.done [#allocation18], 128
    $region29: #{tpu_custom_call.1} parent=1 // pred_fallthru
      _
    // Predicated region
    $region30: #{tpu_custom_call.1} parent=1 // pred_check
      _
    $region31: #{tpu_custom_call.1} parent=1 // pred_check_branch
      %71 = sbr.rel (0) target = $region33
    $region32: #{tpu_custom_call.1} parent=1 // pred_region
      %73 = dma.done [#allocation18], 64
    $region33: #{tpu_custom_call.1} parent=1 // pred_fallthru
      _
    %74 = sfence
    %s75 = sld [smem:[#allocation12]]
    %s76 = sld [smem:[#allocation12 + $0x1]]
    %s77 = sld [smem:[#allocation12 + $0x2]]
    %s78 = sld [smem:[#allocation12 + $0x3]]
    %s79 = sld [smem:[#allocation12 + $0x4]]
    %s80 = sld [smem:[#allocation12 + $0x5]]
    %s81 = sld [smem:[#allocation12 + $0x6]]
    %s82 = sld [smem:[#allocation12 + $0x7]]
    %p83 = scmp.eq.s32.totalorder 0, 0
    // Predicated region
    $region34: #{tpu_custom_call.1} parent=1 // pred_check
      %p84 = pneg %p83
    $region35: #{tpu_custom_call.1} parent=1 // pred_check_branch
      %86 = sbr.rel (%p84) target = $region37
    $region36: #{tpu_custom_call.1} parent=1 // pred_region
      %v87 = vld [vmem:[#allocation19] sm:$0xf]
      %88 = vst [vmem:[#allocation11] sm:$0xf] %v87
    $region37: #{tpu_custom_call.1} parent=1 // pred_fallthru
      _
    %v89 = vld [vmem:[#allocation16] sm:$0xff]
    %v90 = vld [vmem:[#allocation17] sm:$0xff]
    %v91 = vsub.f32 %v89, %v90
    %v92 = vmul.f32 %v91, %v91
    %v93 = vadd.f32 %v92, 1e-10
    %v94 = vrsqrt.pop %v93
    %v95 = vmul.f32 %v94, %v93
    %v96 = vmul.f32 %v95, %v94
    %v97 = vmul.f32 0.5, %v96
    %v98 = vsub.f32 1.5, %v97
    %v99 = vmul.f32 %v94, %v98
    %v100 = vmul.f32 %v93, %v99
    %vm101 = vcmp.eq.f32.partialorder %v93, inf
    %v102 = vsel %vm101, %v93, %v100
    %vm103 = vcmp.eq.f32.partialorder %v93, 0.0
    %v104 = vand.u32 %v93, 2147483648
    %v105 = vsel %vm103, %v104, %v102
    %v106 = vstv %s81
    %v107 = vmul.f32 %v106, %v105
    %v108 = vstv %s75
    %v109 = vmul.f32 %v108, %v89
    %v110 = vstv %s82
    %v111 = vadd.f32 %v109, %v110
    %112 = vst [vmem:[#allocation10] sm:$0xff] %v111
    %v113 = vstv %s80
    %v114 = vadd.f32 %v113, %v107
    %v115 = vadd.f32 %v89, %v114
    %116 = vst [vmem:[#allocation2] sm:$0xff] %v115
    %v117 = vsub.f32 %v89, %v114
    %118 = vst [vmem:[#allocation6] sm:$0xff] %v117
    %s119 = smul.f32 %s80, 2.0
    %v120 = vstv %s119
    %v121 = vadd.f32 %v120, %v107
    %v122 = vadd.f32 %v89, %v121
    %123 = vst [vmem:[#allocation3] sm:$0xff] %v122
    %v124 = vsub.f32 %v89, %v121
    %125 = vst [vmem:[#allocation7] sm:$0xff] %v124
    %s126 = smul.f32 %s80, 3.0
    %v127 = vstv %s126
    %v128 = vadd.f32 %v127, %v107
    %v129 = vadd.f32 %v89, %v128
    %130 = vst [vmem:[#allocation4] sm:$0xff] %v129
    %v131 = vsub.f32 %v89, %v128
    %132 = vst [vmem:[#allocation8] sm:$0xff] %v131
    %s133 = smul.f32 %s80, 4.0
    %v134 = vstv %s133
    %v135 = vadd.f32 %v134, %v107
    %v136 = vadd.f32 %v89, %v135
    %137 = vst [vmem:[#allocation5] sm:$0xff] %v136
    %v138 = vsub.f32 %v89, %v135
    %139 = vst [vmem:[#allocation9] sm:$0xff] %v138
    %v140 = vstv %s76
    %v141 = vstv %s77
    %v142 = vstv %s78
    %v143 = vstv %s79
    %v144 = vld [vmem:[#allocation11] sm:$0xf]
    %v145 = vld [vmem:[#allocation2] sm:$0xff]
    %v146 = vld [vmem:[#allocation3] sm:$0xff]
    %v147 = vld [vmem:[#allocation4] sm:$0xff]
    %v148 = vld [vmem:[#allocation5] sm:$0xff]
    %v149 = vld [vmem:[#allocation6] sm:$0xff]
    %v150 = vld [vmem:[#allocation7] sm:$0xff]
    %v151 = vld [vmem:[#allocation8] sm:$0xff]
    %v152 = vld [vmem:[#allocation9] sm:$0xff]
    %v153 = vld [vmem:[#allocation10] sm:$0xff]
    %v154 = vsub.f32 %v145, %v144
    %v155 = vmax.f32 %v154, 0.0
    %v156 = vsub.f32 %v145, %v155
    %v157 = vsub.f32 %v156, %v149
    %v158 = vmax.f32 %v157, 0.0
    %v159 = vadd.f32 %v149, %v158
    %v161 = vrot.slane %v144, 1
    %v163 = vsub.f32 %v146, %v161
    %v164 = vmax.f32 %v163, 0.0
    %v165 = vsub.f32 %v146, %v164
    %v166 = vsub.f32 %v165, %v150
    %v167 = vmax.f32 %v166, 0.0
    %v168 = vadd.f32 %v150, %v167
    %v169 = vrot.slane %v144, 2
    %v171 = vsub.f32 %v147, %v169
    %v172 = vmax.f32 %v171, 0.0
    %v173 = vsub.f32 %v147, %v172
    %v174 = vsub.f32 %v173, %v151
    %v175 = vmax.f32 %v174, 0.0
    %v176 = vadd.f32 %v151, %v175
    %v177 = vrot.slane %v144, 3
    %v179 = vsub.f32 %v148, %v177
    %v180 = vmax.f32 %v179, 0.0
    %v181 = vsub.f32 %v148, %v180
    %v182 = vsub.f32 %v181, %v152
    %v183 = vmax.f32 %v182, 0.0
    %v184 = vadd.f32 %v152, %v183
    %v185 = vmul.f32 %v140, %v159
    %v186 = vadd.f32 %v153, %v185
    %v187 = vmul.f32 %v141, %v168
    %v188 = vadd.f32 %v186, %v187
    %v189 = vmul.f32 %v142, %v176
    %v190 = vadd.f32 %v188, %v189
    %v191 = vmul.f32 %v143, %v184
    %v192 = vadd.f32 %v190, %v191
    %v194 = vrot.slane %v159, 7
    %v196 = vsub.f32 %v145, %v194
    %v197 = vmax.f32 %v196, 0.0
    %v198 = vsub.f32 %v145, %v197
    %v199 = vsub.f32 %v198, %v149
    %v200 = vmax.f32 %v199, 0.0
    %v201 = vadd.f32 %v149, %v200
    %v203 = vrot.slane %v168, 7
    %v205 = vsub.f32 %v146, %v203
    %v206 = vmax.f32 %v205, 0.0
    %v207 = vsub.f32 %v146, %v206
    %v208 = vsub.f32 %v207, %v150
    %v209 = vmax.f32 %v208, 0.0
    %v210 = vadd.f32 %v150, %v209
    %v212 = vrot.slane %v176, 7
    %v214 = vsub.f32 %v147, %v212
    %v215 = vmax.f32 %v214, 0.0
    %v216 = vsub.f32 %v147, %v215
    %v217 = vsub.f32 %v216, %v151
    %v218 = vmax.f32 %v217, 0.0
    %v219 = vadd.f32 %v151, %v218
    %v221 = vrot.slane %v184, 7
    %v223 = vsub.f32 %v148, %v221
    %v224 = vmax.f32 %v223, 0.0
    %v225 = vsub.f32 %v148, %v224
    %v226 = vsub.f32 %v225, %v152
    %v227 = vmax.f32 %v226, 0.0
    %v228 = vadd.f32 %v152, %v227
    %v229 = vmul.f32 %v140, %v201
    %v230 = vadd.f32 %v153, %v229
    %v231 = vmul.f32 %v141, %v210
    %v232 = vadd.f32 %v230, %v231
    %v233 = vmul.f32 %v142, %v219
    %v234 = vadd.f32 %v232, %v233
    %v235 = vmul.f32 %v143, %v228
    %v236 = vadd.f32 %v234, %v235
    %v238 = vrot.slane %v201, 7
    %v240 = vsub.f32 %v145, %v238
    %v241 = vmax.f32 %v240, 0.0
    %v242 = vsub.f32 %v145, %v241
    %v243 = vsub.f32 %v242, %v149
    %v244 = vmax.f32 %v243, 0.0
    %v245 = vadd.f32 %v149, %v244
    %v247 = vrot.slane %v210, 7
    %v249 = vsub.f32 %v146, %v247
    %v250 = vmax.f32 %v249, 0.0
    %v251 = vsub.f32 %v146, %v250
    %v252 = vsub.f32 %v251, %v150
    %v253 = vmax.f32 %v252, 0.0
    %v254 = vadd.f32 %v150, %v253
    %v256 = vrot.slane %v219, 7
    %v258 = vsub.f32 %v147, %v256
    %v259 = vmax.f32 %v258, 0.0
    %v260 = vsub.f32 %v147, %v259
    %v261 = vsub.f32 %v260, %v151
    %v262 = vmax.f32 %v261, 0.0
    %v263 = vadd.f32 %v151, %v262
    %v265 = vrot.slane %v228, 7
    %v267 = vsub.f32 %v148, %v265
    %v268 = vmax.f32 %v267, 0.0
    %v269 = vsub.f32 %v148, %v268
    %v270 = vsub.f32 %v269, %v152
    %v271 = vmax.f32 %v270, 0.0
    %v272 = vadd.f32 %v152, %v271
    %v273 = vmul.f32 %v140, %v245
    %v274 = vadd.f32 %v153, %v273
    %v275 = vmul.f32 %v141, %v254
    %v276 = vadd.f32 %v274, %v275
    %v277 = vmul.f32 %v142, %v263
    %v278 = vadd.f32 %v276, %v277
    %v279 = vmul.f32 %v143, %v272
    %v280 = vadd.f32 %v278, %v279
    %v282 = vrot.slane %v245, 7
    %v284 = vsub.f32 %v145, %v282
    %v285 = vmax.f32 %v284, 0.0
    %v286 = vsub.f32 %v145, %v285
    %v287 = vsub.f32 %v286, %v149
    %v288 = vmax.f32 %v287, 0.0
    %v289 = vadd.f32 %v149, %v288
    %v291 = vrot.slane %v254, 7
    %v293 = vsub.f32 %v146, %v291
    %v294 = vmax.f32 %v293, 0.0
    %v295 = vsub.f32 %v146, %v294
    %v296 = vsub.f32 %v295, %v150
    %v297 = vmax.f32 %v296, 0.0
    %v298 = vadd.f32 %v150, %v297
    %v300 = vrot.slane %v263, 7
    %v302 = vsub.f32 %v147, %v300
    %v303 = vmax.f32 %v302, 0.0
    %v304 = vsub.f32 %v147, %v303
    %v305 = vsub.f32 %v304, %v151
    %v306 = vmax.f32 %v305, 0.0
    %v307 = vadd.f32 %v151, %v306
    %v309 = vrot.slane %v272, 7
    %v311 = vsub.f32 %v148, %v309
    %v312 = vmax.f32 %v311, 0.0
    %v313 = vsub.f32 %v148, %v312
    %v314 = vsub.f32 %v313, %v152
    %v315 = vmax.f32 %v314, 0.0
    %v316 = vadd.f32 %v152, %v315
    %v317 = vmul.f32 %v140, %v289
    %v318 = vadd.f32 %v153, %v317
    %v319 = vmul.f32 %v141, %v298
    %v320 = vadd.f32 %v318, %v319
    %v321 = vmul.f32 %v142, %v307
    %v322 = vadd.f32 %v320, %v321
    %v323 = vmul.f32 %v143, %v316
    %v324 = vadd.f32 %v322, %v323
    %v326 = vrot.slane %v289, 7
    %v328 = vsub.f32 %v145, %v326
    %v329 = vmax.f32 %v328, 0.0
    %v330 = vsub.f32 %v145, %v329
    %v331 = vsub.f32 %v330, %v149
    %v332 = vmax.f32 %v331, 0.0
    %v333 = vadd.f32 %v149, %v332
    %v335 = vrot.slane %v298, 7
    %v337 = vsub.f32 %v146, %v335
    %v338 = vmax.f32 %v337, 0.0
    %v339 = vsub.f32 %v146, %v338
    %v340 = vsub.f32 %v339, %v150
    %v341 = vmax.f32 %v340, 0.0
    %v342 = vadd.f32 %v150, %v341
    %v344 = vrot.slane %v307, 7
    %v346 = vsub.f32 %v147, %v344
    %v347 = vmax.f32 %v346, 0.0
    %v348 = vsub.f32 %v147, %v347
    %v349 = vsub.f32 %v348, %v151
    %v350 = vmax.f32 %v349, 0.0
    %v351 = vadd.f32 %v151, %v350
    %v353 = vrot.slane %v316, 7
    %v355 = vsub.f32 %v148, %v353
    %v356 = vmax.f32 %v355, 0.0
    %v357 = vsub.f32 %v148, %v356
    %v358 = vsub.f32 %v357, %v152
    %v359 = vmax.f32 %v358, 0.0
    %v360 = vadd.f32 %v152, %v359
    %v361 = vmul.f32 %v140, %v333
    %v362 = vadd.f32 %v153, %v361
    %v363 = vmul.f32 %v141, %v342
    %v364 = vadd.f32 %v362, %v363
    %v365 = vmul.f32 %v142, %v351
    %v366 = vadd.f32 %v364, %v365
    %v367 = vmul.f32 %v143, %v360
    %v368 = vadd.f32 %v366, %v367
    %v370 = vrot.slane %v333, 7
    %v372 = vsub.f32 %v145, %v370
    %v373 = vmax.f32 %v372, 0.0
    %v374 = vsub.f32 %v145, %v373
    %v375 = vsub.f32 %v374, %v149
    %v376 = vmax.f32 %v375, 0.0
    %v377 = vadd.f32 %v149, %v376
    %v379 = vrot.slane %v342, 7
    %v381 = vsub.f32 %v146, %v379
    %v382 = vmax.f32 %v381, 0.0
    %v383 = vsub.f32 %v146, %v382
    %v384 = vsub.f32 %v383, %v150
    %v385 = vmax.f32 %v384, 0.0
    %v386 = vadd.f32 %v150, %v385
    %v388 = vrot.slane %v351, 7
    %v390 = vsub.f32 %v147, %v388
    %v391 = vmax.f32 %v390, 0.0
    %v392 = vsub.f32 %v147, %v391
    %v393 = vsub.f32 %v392, %v151
    %v394 = vmax.f32 %v393, 0.0
    %v395 = vadd.f32 %v151, %v394
    %v397 = vrot.slane %v360, 7
    %v399 = vsub.f32 %v148, %v397
    %v400 = vmax.f32 %v399, 0.0
    %v401 = vsub.f32 %v148, %v400
    %v402 = vsub.f32 %v401, %v152
    %v403 = vmax.f32 %v402, 0.0
    %v404 = vadd.f32 %v152, %v403
    %v405 = vmul.f32 %v140, %v377
    %v406 = vadd.f32 %v153, %v405
    %v407 = vmul.f32 %v141, %v386
    %v408 = vadd.f32 %v406, %v407
    %v409 = vmul.f32 %v142, %v395
    %v410 = vadd.f32 %v408, %v409
    %v411 = vmul.f32 %v143, %v404
    %v412 = vadd.f32 %v410, %v411
    %v414 = vrot.slane %v377, 7
    %v416 = vsub.f32 %v145, %v414
    %v417 = vmax.f32 %v416, 0.0
    %v418 = vsub.f32 %v145, %v417
    %v419 = vsub.f32 %v418, %v149
    %v420 = vmax.f32 %v419, 0.0
    %v421 = vadd.f32 %v149, %v420
    %v423 = vrot.slane %v386, 7
    %v425 = vsub.f32 %v146, %v423
    %v426 = vmax.f32 %v425, 0.0
    %v427 = vsub.f32 %v146, %v426
    %v428 = vsub.f32 %v427, %v150
    %v429 = vmax.f32 %v428, 0.0
    %v430 = vadd.f32 %v150, %v429
    %v432 = vrot.slane %v395, 7
    %v434 = vsub.f32 %v147, %v432
    %v435 = vmax.f32 %v434, 0.0
    %v436 = vsub.f32 %v147, %v435
    %v437 = vsub.f32 %v436, %v151
    %v438 = vmax.f32 %v437, 0.0
    %v439 = vadd.f32 %v151, %v438
    %v441 = vrot.slane %v404, 7
    %v443 = vsub.f32 %v148, %v441
    %v444 = vmax.f32 %v443, 0.0
    %v445 = vsub.f32 %v148, %v444
    %v446 = vsub.f32 %v445, %v152
    %v447 = vmax.f32 %v446, 0.0
    %v448 = vadd.f32 %v152, %v447
    %v449 = vmul.f32 %v140, %v421
    %v450 = vadd.f32 %v153, %v449
    %v451 = vmul.f32 %v141, %v430
    %v452 = vadd.f32 %v450, %v451
    %v453 = vmul.f32 %v142, %v439
    %v454 = vadd.f32 %v452, %v453
    %v455 = vmul.f32 %v143, %v448
    %v456 = vadd.f32 %v454, %v455
    %v458 = vrot.slane %v421, 7
    %v460 = vsub.f32 %v145, %v458
    %v461 = vmax.f32 %v460, 0.0
    %v462 = vsub.f32 %v145, %v461
    %v463 = vsub.f32 %v462, %v149
    %v464 = vmax.f32 %v463, 0.0
    %v465 = vadd.f32 %v149, %v464
    %v467 = vrot.slane %v430, 7
    %v469 = vsub.f32 %v146, %v467
    %v470 = vmax.f32 %v469, 0.0
    %v471 = vsub.f32 %v146, %v470
    %v472 = vsub.f32 %v471, %v150
    %v473 = vmax.f32 %v472, 0.0
    %v474 = vadd.f32 %v150, %v473
    %v476 = vrot.slane %v439, 7
    %v478 = vsub.f32 %v147, %v476
    %v479 = vmax.f32 %v478, 0.0
    %v480 = vsub.f32 %v147, %v479
    %v481 = vsub.f32 %v480, %v151
    %v482 = vmax.f32 %v481, 0.0
    %v483 = vadd.f32 %v151, %v482
    %v485 = vrot.slane %v448, 7
    %v487 = vsub.f32 %v148, %v485
    %v488 = vmax.f32 %v487, 0.0
    %v489 = vsub.f32 %v148, %v488
    %v490 = vsub.f32 %v489, %v152
    %v491 = vmax.f32 %v490, 0.0
    %v492 = vadd.f32 %v152, %v491
    %v493 = vmul.f32 %v140, %v465
    %v494 = vadd.f32 %v153, %v493
    %v495 = vmul.f32 %v141, %v474
    %v496 = vadd.f32 %v494, %v495
    %v497 = vmul.f32 %v142, %v483
    %v498 = vadd.f32 %v496, %v497
    %v499 = vmul.f32 %v143, %v492
    %v500 = vadd.f32 %v498, %v499
    %vm501 = vcmask 1040384
    %v502 = vsel %vm501, %v192, %v236
    %vm503 = vcmask 1041408
    %v504 = vsel %vm503, %v502, %v280
    %vm505 = vcmask 1042432
    %v506 = vsel %vm505, %v504, %v324
    %vm507 = vcmask 1043456
    %v508 = vsel %vm507, %v506, %v368
    %vm509 = vcmask 1044480
    %v510 = vsel %vm509, %v508, %v412
    %vm511 = vcmask 1045504
    %v512 = vsel %vm511, %v510, %v456
    %vm513 = vcmask 1046528
    %v514 = vsel %vm513, %v512, %v500
    %515 = vst [vmem:[#allocation20] sm:$0xff] %v514
    %v517 = vrot.slane %v465, 7
    %v520 = vrot.slane %v474, 6
    %v523 = vrot.slane %v483, 5
    %v526 = vrot.slane %v492, 4
    %v528 = vsel %vm501, %v517, %v520
    %v529 = vsel %vm503, %v528, %v523
    %v530 = vsel %vm505, %v529, %v526
    %531 = vst [vmem:[#allocation11] sm:$0xf] %v530
    // Predicated region
    $region38: #{tpu_custom_call.1} parent=1 // pred_check
      %p532 = pneg %p83
    $region39: #{tpu_custom_call.1} parent=1 // pred_check_branch
      %534 = sbr.rel (%p532) target = $region41
    $region40: #{tpu_custom_call.1} parent=1 // pred_region
      %v535 = vld [vmem:[#allocation11] sm:$0xf]
      %536 = vst [vmem:[#allocation21] sm:$0xf] %v535
    $region41: #{tpu_custom_call.1} parent=1 // pred_fallthru
      _
    // Predicated region
    $region42: #{tpu_custom_call.1} parent=1 // pred_check
      _
    $region43: #{tpu_custom_call.1} parent=1 // pred_check_branch
      %538 = sbr.rel (0) target = $region45
    $region44: #{tpu_custom_call.1} parent=1 // pred_region
      %540 = vsyncadd [#allocation14], 0
      %s542 = sshll.u32 [#allocation20], 4
      %s543 = int_to_ptr.vmem [resolvable:$true] %s542
      %s544 = sshll.u32 %s4, 4
      %s545 = int_to_ptr.hbm [resolvable:$true] %s544
      %547 = dma.vmem_to_hbm [thread:$0]  %s543, 128, %s545, [#allocation14]
    $region45: #{tpu_custom_call.1} parent=1 // pred_fallthru
      _
    // Predicated region
    $region46: #{tpu_custom_call.1} parent=1 // pred_check
      _
    $region47: #{tpu_custom_call.1} parent=1 // pred_check_branch
      %549 = sbr.rel (0) target = $region49
    $region48: #{tpu_custom_call.1} parent=1 // pred_region
      %551 = vsyncadd [#allocation22], 0
      %s553 = sshll.u32 [#allocation21], 4
      %s554 = int_to_ptr.vmem [resolvable:$true] %s553
      %s555 = sshll.u32 %s5, 4
      %s556 = int_to_ptr.hbm [resolvable:$true] %s555
      %558 = dma.vmem_to_hbm [thread:$0]  %s554, 64, %s556, [#allocation22]
    $region49: #{tpu_custom_call.1} parent=1 // pred_fallthru
      _
    // Predicated region
    $region50: #{tpu_custom_call.1} parent=1 // pred_check
      _
    $region51: #{tpu_custom_call.1} parent=1 // pred_check_branch
      %560 = sbr.rel (0) target = $region53
    $region52: #{tpu_custom_call.1} parent=1 // pred_region
      %562 = dma.done [#allocation14], 128
    $region53: #{tpu_custom_call.1} parent=1 // pred_fallthru
      _
    // Predicated region
    $region54: #{tpu_custom_call.1} parent=1 // pred_check
      _
    $region55: #{tpu_custom_call.1} parent=1 // pred_check_branch
      %564 = sbr.rel (0) target = $region57
    $region56: #{tpu_custom_call.1} parent=1 // pred_region
      %566 = dma.done [#allocation22], 64
    $region57: #{tpu_custom_call.1} parent=1 // pred_fallthru
      _
    %567 = vsyncpa [#allocation13], 1
    %568 = vsyncpa [#allocation18], 1
    %569 = vsyncpa [#allocation14], 1
    %570 = vsyncpa [#allocation22], 1
    %571 = vsyncpa [#allocation15], 1

</llo_original>
